<compile_context>
chip_gen: v6e
topology: v6e:2x2x1
jax: 0.10.0
libtpu: 0.0.40
codegen_flags: <defaults>
</compile_context>

<pallas_src>
import functools
import math

import jax
import jax.numpy as jnp
from jax import lax
from jax.experimental import pallas as pl
from jax.experimental.pallas import tpu as pltpu


def _round_up(x: int, m: int) -> int:
    return ((x + m - 1) // m) * m


# ----------------------------- fused kernel ------------------------------- #
def _mlp_fused_kernel(*refs, n_layers: int, transpose_last: bool):
    """refs = (x, w0, b0, w1, b1, ..., wL, bL, o).

    Hidden layers:  h = relu(h @ W_i + b_i)
    Last layer (transpose_last, d_last == 1):
        o(1, TILE_N) = W_L^T @ h^T + b_L     (lane-dense over the batch axis)
    Last layer (otherwise):
        o(TILE_N, d_last) = h @ W_L + b_L
    """
    x_ref = refs[0]
    o_ref = refs[-1]

    h = x_ref[...]                                       # (TILE_N, d0), f32

    # Hidden layers (ReLU between layers, matching the PyTorch module).
    for i in range(n_layers - 1):
        w = refs[1 + 2 * i][...]                         # (d_in, d_out)
        b = refs[2 + 2 * i][...]                         # (1, d_out)
        h = jnp.dot(h, w, preferred_element_type=jnp.float32) + b
        h = jnp.maximum(h, 0.0)

    w_l = refs[1 + 2 * (n_layers - 1)][...]
    b_l = refs[2 + 2 * (n_layers - 1)][...]
    if transpose_last:
        # w_l is pre-transposed (d_last, d_in); contract the feature dims so the
        # result is (d_last, TILE_N) -> lane-dense store over the batch axis.
        out = lax.dot_general(
            w_l, h,
            dimension_numbers=(((1,), (1,)), ((), ())),
            preferred_element_type=jnp.float32,
        ) + b_l                                          # (d_last, TILE_N)
    else:
        out = jnp.dot(h, w_l, preferred_element_type=jnp.float32) + b_l
    o_ref[...] = out.astype(o_ref.dtype)


# ------------------------------ MLP wrapper ------------------------------- #
def mlp_forward(x, weights, biases, tile_n: int = 512):
    """Mirror of Mlp.forward: matmul+bias per layer, ReLU between, flatten.

    Single fused pallas_call, tiled over the batch axis; weights stay
    VMEM-resident (constant index_map) while x / out tiles stream.
    """
    n_layers = len(weights)
    n, d0 = x.shape
    d_last = weights[-1].shape[1]
    transpose_last = (d_last == 1)

    # Tile size: multiple of 128 (lane-dense output), capped at tile_n.
    tile = max(128, min(tile_n, _round_up(n, 128)))
    num_tiles = pl.cdiv(n, tile)
    n_pad = num_tiles * tile

    x = x.astype(jnp.float32)
    if n_pad != n:
        # Zero-pad the tail tile; padded rows are computed (cheaply) and then
        # sliced away below, so nothing out-of-bounds is ever exposed.
        x = jnp.pad(x, ((0, n_pad - n), (0, 0)))

    inputs = [x]
    in_specs = [pl.BlockSpec((tile, d0), lambda i: (i, 0))]

    # Hidden-layer weights / biases: full-array blocks, pinned in VMEM across
    # all grid steps via constant index maps.
    for li in range(n_layers - 1):
        w = weights[li].astype(jnp.float32)
        b2 = biases[li].reshape(1, -1).astype(jnp.float32)
        inputs += [w, b2]
        in_specs += [
            pl.BlockSpec(w.shape, lambda i: (0, 0)),
            pl.BlockSpec(b2.shape, lambda i: (0, 0)),
        ]

    if transpose_last:
        # Pre-transpose so the kernel's final store is lane-dense over batch.
        w_l = weights[-1].T.astype(jnp.float32)           # (1, d_in)
        b_l = biases[-1].reshape(-1, 1).astype(jnp.float32)  # (1, 1)
        out_shape = jax.ShapeDtypeStruct((d_last, n_pad), jnp.float32)
        out_spec = pl.BlockSpec((d_last, tile), lambda i: (0, i))
    else:
        w_l = weights[-1].astype(jnp.float32)             # (d_in, d_last)
        b_l = biases[-1].reshape(1, -1).astype(jnp.float32)
        out_shape = jax.ShapeDtypeStruct((n_pad, d_last), jnp.float32)
        out_spec = pl.BlockSpec((tile, d_last), lambda i: (i, 0))
    inputs += [w_l, b_l]
    in_specs += [
        pl.BlockSpec(w_l.shape, lambda i: (0, 0)),
        pl.BlockSpec(b_l.shape, lambda i: (0, 0)),
    ]

    kernel = functools.partial(
        _mlp_fused_kernel, n_layers=n_layers, transpose_last=transpose_last
    )
    out = pl.pallas_call(
        kernel,
        out_shape=out_shape,
        grid_spec=pl.GridSpec(
            grid=(num_tiles,),
            in_specs=in_specs,
            out_specs=out_spec,
        ),
        compiler_params=pltpu.CompilerParams(
            dimension_semantics=("parallel",),   # v7x: shard batch tiles over 2 TCs
        ),
    )(*inputs)

    # Flatten row-major exactly like torch's h.view(-1) (samples outer,
    # features inner), dropping any padded rows.
    if transpose_last:
        return out[0, :n]                        # (n,) == (n * 1,)
    return out[:n].reshape(-1)                   # (n * d_last,)


def init_mlp_params(layer_sizes, key, init_type="normal"):
    """Deterministic parameter init matching Mlp.__init__ (xavier, gain=sqrt(2))."""
    weights, biases = [], []
    for d_in, d_out in zip(layer_sizes[:-1], layer_sizes[1:]):
        key, sub = jax.random.split(key)
        gain = math.sqrt(2.0)
        if init_type == "normal":
            std = gain * math.sqrt(2.0 / (d_in + d_out))      # xavier_normal_
            w = std * jax.random.normal(sub, (d_in, d_out), dtype=jnp.float32)
        else:  # 'uniform'
            lim = gain * math.sqrt(6.0 / (d_in + d_out))      # xavier_uniform_
            w = jax.random.uniform(sub, (d_in, d_out), dtype=jnp.float32,
                                   minval=-lim, maxval=lim)
        weights.append(w)
        biases.append(jnp.zeros((d_out,), dtype=jnp.float32))  # nn.init.zeros_
    return weights, biases


def _reference_forward(x, weights, biases):
    h = x
    for i in range(len(weights)):
        h = h @ weights[i] + biases[i]
        if i < len(weights) - 1:
            h = jnp.maximum(h, 0.0)
    return h.reshape(-1)


# --------------------------------- main ----------------------------------- #
if __name__ == "__main__":
    key = jax.random.PRNGKey(0)
    key, xkey = jax.random.split(key)

    # Shapes consistent with the module: (n, d) input, MLP layer sizes.
    layer_sizes = [16, 32, 32, 1]
    weights, biases = init_mlp_params(layer_sizes, key, init_type="normal")

    fwd = jax.jit(mlp_forward, static_argnames=("tile_n",))

    # Exercise both an exact-multiple batch (2 tiles of 512) and a ragged one
    # (tail tile is zero-padded inside the wrapper and sliced away).
    for n in (1024, 200):
        x = jax.random.normal(jax.random.fold_in(xkey, n),
                              (n, layer_sizes[0]), dtype=jnp.float32)
        out = jax.block_until_ready(fwd(x, weights, biases))

        # Sanity: output is flattened (n * last_layer_size,), as in h.view(-1).
        assert out.shape == (n * layer_sizes[-1],), out.shape

        ref = _reference_forward(x, weights, biases)
        assert jnp.allclose(out, ref, atol=1e-4, rtol=1e-4), (n, out, ref)

    print("KERNEL_OK")
</pallas_src>

<mosaic_0001>
module attributes {stable_mosaic.version = 11 : i64} {
  func.func @_mlp_fused_kernel(%arg0: i32, %arg1: memref<512x16xf32, #tpu.memory_space<vmem>>, %arg2: memref<16x32xf32, #tpu.memory_space<vmem>>, %arg3: memref<1x32xf32, #tpu.memory_space<vmem>>, %arg4: memref<32x32xf32, #tpu.memory_space<vmem>>, %arg5: memref<1x32xf32, #tpu.memory_space<vmem>>, %arg6: memref<1x32xf32, #tpu.memory_space<vmem>>, %arg7: memref<1x1xf32, #tpu.memory_space<vmem>>, %arg8: memref<1x512xf32, #tpu.memory_space<vmem>>) attributes {dimension_semantics = [#tpu.dimension_semantics<parallel>], iteration_bounds = array<i64: 2>, scalar_prefetch = 0 : i64, scratch_operands = 0 : i64, tpu.core_type = #tpu.core_type<tc>, window_params = [{transform_indices = @transform_0, window_bounds = array<i64: 512, 16>}, {pipeline_mode = #tpu.pipeline_mode<synchronous>, transform_indices = @transform_1, window_bounds = array<i64: 16, 32>}, {pipeline_mode = #tpu.pipeline_mode<synchronous>, transform_indices = @transform_2, window_bounds = array<i64: 1, 32>}, {pipeline_mode = #tpu.pipeline_mode<synchronous>, transform_indices = @transform_3, window_bounds = array<i64: 32, 32>}, {pipeline_mode = #tpu.pipeline_mode<synchronous>, transform_indices = @transform_4, window_bounds = array<i64: 1, 32>}, {pipeline_mode = #tpu.pipeline_mode<synchronous>, transform_indices = @transform_5, window_bounds = array<i64: 1, 32>}, {pipeline_mode = #tpu.pipeline_mode<synchronous>, transform_indices = @transform_6, window_bounds = array<i64: 1, 1>}, {transform_indices = @transform_7, window_bounds = array<i64: 1, 512>}]} {
    %c0 = arith.constant 0 : index
    %c0_0 = arith.constant 0 : index
    %0 = vector.load %arg1[%c0, %c0_0] : memref<512x16xf32, #tpu.memory_space<vmem>>, vector<512x16xf32>
    %c0_1 = arith.constant 0 : index
    %c0_2 = arith.constant 0 : index
    %1 = vector.load %arg2[%c0_1, %c0_2] : memref<16x32xf32, #tpu.memory_space<vmem>>, vector<16x32xf32>
    %c0_3 = arith.constant 0 : index
    %c0_4 = arith.constant 0 : index
    %2 = vector.load %arg3[%c0_3, %c0_4] : memref<1x32xf32, #tpu.memory_space<vmem>>, vector<1x32xf32>
    %cst = arith.constant dense<0.000000e+00> : vector<512x32xf32>
    %3 = tpu.matmul %0, %1, %cst {dimension_numbers = #tpu.dot_dimension_numbers<[1], [0], [0], [1], [0, 0, 1, 1], [], []>} : vector<512x16xf32>, vector<16x32xf32>, vector<512x32xf32> -> vector<512x32xf32>
    %4 = vector.broadcast %2 : vector<1x32xf32> to vector<512x32xf32>
    %5 = arith.addf %3, %4 : vector<512x32xf32>
    %cst_5 = arith.constant 0.000000e+00 : f32
    %6 = vector.broadcast %cst_5 : f32 to vector<512x32xf32>
    %7 = arith.maximumf %5, %6 : vector<512x32xf32>
    %c0_6 = arith.constant 0 : index
    %c0_7 = arith.constant 0 : index
    %8 = vector.load %arg4[%c0_6, %c0_7] : memref<32x32xf32, #tpu.memory_space<vmem>>, vector<32x32xf32>
    %c0_8 = arith.constant 0 : index
    %c0_9 = arith.constant 0 : index
    %9 = vector.load %arg5[%c0_8, %c0_9] : memref<1x32xf32, #tpu.memory_space<vmem>>, vector<1x32xf32>
    %cst_10 = arith.constant dense<0.000000e+00> : vector<512x32xf32>
    %10 = tpu.matmul %7, %8, %cst_10 {dimension_numbers = #tpu.dot_dimension_numbers<[1], [0], [0], [1], [0, 0, 1, 1], [], []>} : vector<512x32xf32>, vector<32x32xf32>, vector<512x32xf32> -> vector<512x32xf32>
    %11 = vector.broadcast %9 : vector<1x32xf32> to vector<512x32xf32>
    %12 = arith.addf %10, %11 : vector<512x32xf32>
    %cst_11 = arith.constant 0.000000e+00 : f32
    %13 = vector.broadcast %cst_11 : f32 to vector<512x32xf32>
    %14 = arith.maximumf %12, %13 : vector<512x32xf32>
    %c0_12 = arith.constant 0 : index
    %c0_13 = arith.constant 0 : index
    %15 = vector.load %arg6[%c0_12, %c0_13] : memref<1x32xf32, #tpu.memory_space<vmem>>, vector<1x32xf32>
    %c0_14 = arith.constant 0 : index
    %c0_15 = arith.constant 0 : index
    %16 = vector.load %arg7[%c0_14, %c0_15] : memref<1x1xf32, #tpu.memory_space<vmem>>, vector<1x1xf32>
    %cst_16 = arith.constant dense<0.000000e+00> : vector<1x512xf32>
    %17 = tpu.matmul %15, %14, %cst_16 {dimension_numbers = #tpu.dot_dimension_numbers<[1], [1], [0], [0], [0, 0, 1, 0], [], []>} : vector<1x32xf32>, vector<512x32xf32>, vector<1x512xf32> -> vector<1x512xf32>
    %18 = vector.broadcast %16 : vector<1x1xf32> to vector<1x512xf32>
    %19 = arith.addf %17, %18 : vector<1x512xf32>
    %c0_17 = arith.constant 0 : index
    %c0_18 = arith.constant 0 : index
    %20 = vector.load %arg8[%c0_17, %c0_18] : memref<1x512xf32, #tpu.memory_space<vmem>>, vector<1x512xf32>
    tpu.vector_store %arg8[%c0_17, %c0_18], %19 {strides = array<i32>} : memref<1x512xf32, #tpu.memory_space<vmem>>, vector<1x512xf32>,
    return
  }
  func.func @transform_0(%arg0: i32) -> (i32, i32) {
    %c0_i32 = arith.constant 0 : i32
    %c0_i32_0 = arith.constant 0 : i32
    return %arg0, %c0_i32 : i32, i32
  }
  func.func @transform_1(%arg0: i32) -> (i32, i32) {
    %c0_i32 = arith.constant 0 : i32
    %c0_i32_0 = arith.constant 0 : i32
    %c0_i32_1 = arith.constant 0 : i32
    return %c0_i32, %c0_i32_0 : i32, i32
  }
  func.func @transform_2(%arg0: i32) -> (i32, i32) {
    %c0_i32 = arith.constant 0 : i32
    %c0_i32_0 = arith.constant 0 : i32
    %c0_i32_1 = arith.constant 0 : i32
    return %c0_i32, %c0_i32_0 : i32, i32
  }
  func.func @transform_3(%arg0: i32) -> (i32, i32) {
    %c0_i32 = arith.constant 0 : i32
    %c0_i32_0 = arith.constant 0 : i32
    %c0_i32_1 = arith.constant 0 : i32
    return %c0_i32, %c0_i32_0 : i32, i32
  }
  func.func @transform_4(%arg0: i32) -> (i32, i32) {
    %c0_i32 = arith.constant 0 : i32
    %c0_i32_0 = arith.constant 0 : i32
    %c0_i32_1 = arith.constant 0 : i32
    return %c0_i32, %c0_i32_0 : i32, i32
  }
  func.func @transform_5(%arg0: i32) -> (i32, i32) {
    %c0_i32 = arith.constant 0 : i32
    %c0_i32_0 = arith.constant 0 : i32
    %c0_i32_1 = arith.constant 0 : i32
    return %c0_i32, %c0_i32_0 : i32, i32
  }
  func.func @transform_6(%arg0: i32) -> (i32, i32) {
    %c0_i32 = arith.constant 0 : i32
    %c0_i32_0 = arith.constant 0 : i32
    %c0_i32_1 = arith.constant 0 : i32
    return %c0_i32, %c0_i32_0 : i32, i32
  }
  func.func @transform_7(%arg0: i32) -> (i32, i32) {
    %c0_i32 = arith.constant 0 : i32
    %c0_i32_0 = arith.constant 0 : i32
    return %c0_i32, %arg0 : i32, i32
  }
}

</mosaic_0001>

<llo_original>
// kernel: mlp_forward.1
$region0: #{mlp_forward.1}
  #allocation0 [shape = 'u32[]', space=smem, size = 0x4, offset = 0x4, fixed_abs, tag = 'smem constant byte address 0x4 - core index']
  #allocation1 [shape = 'u32[144,128]{1,0:T(1,128)}', space=vmem, size = 0x12000, scoped, tag = 'internal scratch']
  #allocation2 [shape = 'f32[1,1]{1,0:T(1,128)S(1)}', space=vmem, size = 0x200, scoped, tag = 'scoped memory for mlp_forward.1']
  %s0 = inlined_call_operand.vmem [shape: f32[1024,16], index: 0, kind: input, shape index: {}]
  %s1 = inlined_call_operand.vmem [shape: f32[16,32], index: 1, kind: input, shape index: {}]
  %s2 = inlined_call_operand.vmem [shape: f32[1,32], index: 2, kind: input, shape index: {}]
  %s3 = inlined_call_operand.vmem [shape: f32[32,32], index: 3, kind: input, shape index: {}]
  %s4 = inlined_call_operand.vmem [shape: f32[1,32], index: 4, kind: input, shape index: {}]
  %s5 = inlined_call_operand.vmem [shape: f32[1,32], index: 5, kind: input, shape index: {}]
  %s6 = inlined_call_operand.<no memory space> [shape: f32[1,1], index: 6, kind: input, shape index: {}]
  %s7 = inlined_call_operand.hbm [shape: f32[1,1024], index: 7, kind: output, shape index: {}]
  %s8 = sld [smem:[#allocation0]]
  $region61: #{mlp_forward.1} parent=0
    _
  %s10 = ssub.s32 1, %s8
  %s11 = scalar_select 0, %s10, %s8
  %v12 = vstv %s6
  %13 = vst [vmem:[#allocation2] sm:$0x1] %v12
  $region1: #{mlp_forward.1} parent=0
    #allocation3 [shape = 'u8[4096]{0}', space=vmem, size = 0x1000, scoped, tag = 'output window, operand 0']
    #allocation4 [shape = 's32[2]{0}', space=sflag, size = 0x8, scoped, tag = 'scoped memory for mlp_forward.1']
    %14 = vsyncpa [#allocation4], 0
    %s15 = scalar_lea.sflag [#allocation4], 1
    %16 = vsyncpa %s15, 0
    loop: start=0, step=1, limit=4
    $region2: #{mlp_forward.1} parent=1 // loop_pre_header
      _
    $region3: #{mlp_forward.1} parent=1 // loop_header
      %s18 = sphi 0, %s22
      %p19 = scmp.ge.s32.totalorder %s18, 4
      %s28 = sphi 0, %s30
      %s31 = sphi 0, %s28
      %s32 = sphi 0, %s31
      %s48 = sphi 0, %s32
      %s52 = sphi 0, %s52
      %s54 = sphi 0, %s52
      %s55 = sphi 0, %s54
      %s69 = sphi 0, %s55
      %s73 = sphi 0, %s73
      %s75 = sphi 0, %s73
      %s76 = sphi 0, %s75
      %s90 = sphi 0, %s76
      %s94 = sphi 0, %s94
      %s96 = sphi 0, %s94
      %s97 = sphi 0, %s96
      %s111 = sphi 0, %s97
      %s115 = sphi 0, %s115
      %s117 = sphi 0, %s115
      %s118 = sphi 0, %s117
      %s132 = sphi 0, %s118
      %s136 = sphi 0, %s136
      %s138 = sphi 0, %s136
      %s139 = sphi 0, %s138
      %s153 = sphi 0, %s139
      %s157 = sphi 0, %s157
      %s159 = sphi 0, %s157
      %s160 = sphi 0, %s159
      %s174 = sphi 0, %s160
      %s180 = sphi 0, %s182
      %s183 = sphi 0, %s180
      %s184 = sphi 0, %s183
      %s200 = sphi 0, %s184
    $region4: #{mlp_forward.1} parent=1 // loop_header_branch
      %21 = sbr.rel (%p19) target = $region8
    $region5: #{mlp_forward.1} parent=1 // loop_body
      %s23 = ssub.s32 %s18, 1
      %s24 = ssub.s32 %s18, 2
      %s25 = sadd.s32 %s18, 1
      %s26 = ssub.s32 %s18, %s25
      %p27 = scmp.eq.s32.totalorder %s26, 0
      %s29 = sadd.s32 %s28, 1
      %s30 = scalar_select %p27, %s28, %s29
      %p33 = pneg %p27
      %p34 = scmp.eq.s32.totalorder %s18, 1
      %p35 = por %p33, %p34
      %p36 = scmp.ne.s32.totalorder %s28, %s31
      %p37 = scmp.eq.s32.totalorder %s18, 0
      %p38 = por %p36, %p37
      %p39 = scmp.ne.s32.totalorder %s28, %s31
      %p40 = scmp.eq.s32.totalorder %s23, 1
      %p41 = por %p39, %p40
      %p42 = scmp.ne.s32.totalorder %s31, %s32
      %p43 = scmp.eq.s32.totalorder %s23, 0
      %p44 = por %p42, %p43
      %p45 = scmp.ne.s32.totalorder %s31, %s32
      %p46 = scmp.eq.s32.totalorder %s24, 1
      %p47 = por %p45, %p46
      %p49 = scmp.ne.s32.totalorder %s32, %s48
      %p50 = scmp.eq.s32.totalorder %s24, 0
      %p51 = por %p49, %p50
      %s53 = sadd.s32 %s52, 1
      %p56 = scmp.eq.s32.totalorder %s18, 1
      %p57 = scmp.ne.s32.totalorder %s52, %s54
      %p58 = scmp.eq.s32.totalorder %s18, 0
      %p59 = por %p57, %p58
      %p60 = scmp.ne.s32.totalorder %s52, %s54
      %p61 = scmp.eq.s32.totalorder %s23, 1
      %p62 = por %p60, %p61
      %p63 = scmp.ne.s32.totalorder %s54, %s55
      %p64 = scmp.eq.s32.totalorder %s23, 0
      %p65 = por %p63, %p64
      %p66 = scmp.ne.s32.totalorder %s54, %s55
      %p67 = scmp.eq.s32.totalorder %s24, 1
      %p68 = por %p66, %p67
      %p70 = scmp.ne.s32.totalorder %s55, %s69
      %p71 = scmp.eq.s32.totalorder %s24, 0
      %p72 = por %p70, %p71
      %s74 = sadd.s32 %s73, 1
      %p77 = scmp.eq.s32.totalorder %s18, 1
      %p78 = scmp.ne.s32.totalorder %s73, %s75
      %p79 = scmp.eq.s32.totalorder %s18, 0
      %p80 = por %p78, %p79
      %p81 = scmp.ne.s32.totalorder %s73, %s75
      %p82 = scmp.eq.s32.totalorder %s23, 1
      %p83 = por %p81, %p82
      %p84 = scmp.ne.s32.totalorder %s75, %s76
      %p85 = scmp.eq.s32.totalorder %s23, 0
      %p86 = por %p84, %p85
      %p87 = scmp.ne.s32.totalorder %s75, %s76
      %p88 = scmp.eq.s32.totalorder %s24, 1
      %p89 = por %p87, %p88
      %p91 = scmp.ne.s32.totalorder %s76, %s90
      %p92 = scmp.eq.s32.totalorder %s24, 0
      %p93 = por %p91, %p92
      %s95 = sadd.s32 %s94, 1
      %p98 = scmp.eq.s32.totalorder %s18, 1
      %p99 = scmp.ne.s32.totalorder %s94, %s96
      %p100 = scmp.eq.s32.totalorder %s18, 0
      %p101 = por %p99, %p100
      %p102 = scmp.ne.s32.totalorder %s94, %s96
      %p103 = scmp.eq.s32.totalorder %s23, 1
      %p104 = por %p102, %p103
      %p105 = scmp.ne.s32.totalorder %s96, %s97
      %p106 = scmp.eq.s32.totalorder %s23, 0
      %p107 = por %p105, %p106
      %p108 = scmp.ne.s32.totalorder %s96, %s97
      %p109 = scmp.eq.s32.totalorder %s24, 1
      %p110 = por %p108, %p109
      %p112 = scmp.ne.s32.totalorder %s97, %s111
      %p113 = scmp.eq.s32.totalorder %s24, 0
      %p114 = por %p112, %p113
      %s116 = sadd.s32 %s115, 1
      %p119 = scmp.eq.s32.totalorder %s18, 1
      %p120 = scmp.ne.s32.totalorder %s115, %s117
      %p121 = scmp.eq.s32.totalorder %s18, 0
      %p122 = por %p120, %p121
      %p123 = scmp.ne.s32.totalorder %s115, %s117
      %p124 = scmp.eq.s32.totalorder %s23, 1
      %p125 = por %p123, %p124
      %p126 = scmp.ne.s32.totalorder %s117, %s118
      %p127 = scmp.eq.s32.totalorder %s23, 0
      %p128 = por %p126, %p127
      %p129 = scmp.ne.s32.totalorder %s117, %s118
      %p130 = scmp.eq.s32.totalorder %s24, 1
      %p131 = por %p129, %p130
      %p133 = scmp.ne.s32.totalorder %s118, %s132
      %p134 = scmp.eq.s32.totalorder %s24, 0
      %p135 = por %p133, %p134
      %s137 = sadd.s32 %s136, 1
      %p140 = scmp.eq.s32.totalorder %s18, 1
      %p141 = scmp.ne.s32.totalorder %s136, %s138
      %p142 = scmp.eq.s32.totalorder %s18, 0
      %p143 = por %p141, %p142
      %p144 = scmp.ne.s32.totalorder %s136, %s138
      %p145 = scmp.eq.s32.totalorder %s23, 1
      %p146 = por %p144, %p145
      %p147 = scmp.ne.s32.totalorder %s138, %s139
      %p148 = scmp.eq.s32.totalorder %s23, 0
      %p149 = por %p147, %p148
      %p150 = scmp.ne.s32.totalorder %s138, %s139
      %p151 = scmp.eq.s32.totalorder %s24, 1
      %p152 = por %p150, %p151
      %p154 = scmp.ne.s32.totalorder %s139, %s153
      %p155 = scmp.eq.s32.totalorder %s24, 0
      %p156 = por %p154, %p155
      %s158 = sadd.s32 %s157, 1
      %p161 = scmp.eq.s32.totalorder %s18, 1
      %p162 = scmp.ne.s32.totalorder %s157, %s159
      %p163 = scmp.eq.s32.totalorder %s18, 0
      %p164 = por %p162, %p163
      %p165 = scmp.ne.s32.totalorder %s157, %s159
      %p166 = scmp.eq.s32.totalorder %s23, 1
      %p167 = por %p165, %p166
      %p168 = scmp.ne.s32.totalorder %s159, %s160
      %p169 = scmp.eq.s32.totalorder %s23, 0
      %p170 = por %p168, %p169
      %p171 = scmp.ne.s32.totalorder %s159, %s160
      %p172 = scmp.eq.s32.totalorder %s24, 1
      %p173 = por %p171, %p172
      %p175 = scmp.ne.s32.totalorder %s160, %s174
      %p176 = scmp.eq.s32.totalorder %s24, 0
      %p177 = por %p175, %p176
      %s178 = ssub.s32 %s18, %s25
      %p179 = scmp.eq.s32.totalorder %s178, 0
      %s181 = sadd.s32 %s180, 1
      %s182 = scalar_select %p179, %s180, %s181
      %p185 = pneg %p179
      %p186 = scmp.eq.s32.totalorder %s18, 1
      %p187 = por %p185, %p186
      %p188 = scmp.ne.s32.totalorder %s180, %s183
      %p189 = scmp.eq.s32.totalorder %s18, 0
      %p190 = por %p188, %p189
      %p191 = scmp.ne.s32.totalorder %s180, %s183
      %p192 = scmp.eq.s32.totalorder %s23, 1
      %p193 = por %p191, %p192
      %p194 = scmp.ne.s32.totalorder %s183, %s184
      %p195 = scmp.eq.s32.totalorder %s23, 0
      %p196 = por %p194, %p195
      %p197 = scmp.ne.s32.totalorder %s183, %s184
      %p198 = scmp.eq.s32.totalorder %s24, 1
      %p199 = por %p197, %p198
      %p201 = scmp.ne.s32.totalorder %s184, %s200
      %p202 = scmp.eq.s32.totalorder %s24, 0
      %p203 = por %p201, %p202
      %p204 = scmp.le.s32.totalorder 1, %s18
      %p205 = scmp.lt.s32.totalorder %s18, 3
      %p206 = pnand %p204, %p205
      %p207 = pneg %p206
      // Predicated region
      $region9: #{mlp_forward.1} parent=5 // pred_check
        _
      $region10: #{mlp_forward.1} parent=5 // pred_check_branch
        %209 = sbr.rel (%p206) target = $region12
      $region11: #{mlp_forward.1} parent=5 // pred_region
        %s210 = ssub.s32 %s18, 1
        // Predicated region
        $region13: #{mlp_forward.1} parent=11 // pred_check
          %p211 = pneg %p65
        $region14: #{mlp_forward.1} parent=11 // pred_check_branch
          %213 = sbr.rel (%p211) target = $region16
        $region15: #{mlp_forward.1} parent=11 // pred_region
          _
        $region16: #{mlp_forward.1} parent=11 // pred_fallthru
          _
        // Predicated region
        $region17: #{mlp_forward.1} parent=11 // pred_check
          %p214 = pneg %p86
        $region18: #{mlp_forward.1} parent=11 // pred_check_branch
          %216 = sbr.rel (%p214) target = $region20
        $region19: #{mlp_forward.1} parent=11 // pred_region
          _
        $region20: #{mlp_forward.1} parent=11 // pred_fallthru
          _
        // Predicated region
        $region21: #{mlp_forward.1} parent=11 // pred_check
          %p217 = pneg %p107
        $region22: #{mlp_forward.1} parent=11 // pred_check_branch
          %219 = sbr.rel (%p217) target = $region24
        $region23: #{mlp_forward.1} parent=11 // pred_region
          _
        $region24: #{mlp_forward.1} parent=11 // pred_fallthru
          _
        // Predicated region
        $region25: #{mlp_forward.1} parent=11 // pred_check
          %p220 = pneg %p128
        $region26: #{mlp_forward.1} parent=11 // pred_check_branch
          %222 = sbr.rel (%p220) target = $region28
        $region27: #{mlp_forward.1} parent=11 // pred_region
          _
        $region28: #{mlp_forward.1} parent=11 // pred_fallthru
          _
        // Predicated region
        $region29: #{mlp_forward.1} parent=11 // pred_check
          %p223 = pneg %p149
        $region30: #{mlp_forward.1} parent=11 // pred_check_branch
          %225 = sbr.rel (%p223) target = $region32
        $region31: #{mlp_forward.1} parent=11 // pred_region
          _
        $region32: #{mlp_forward.1} parent=11 // pred_fallthru
          _
        // Predicated region
        $region33: #{mlp_forward.1} parent=11 // pred_check
          %p226 = pneg %p170
        $region34: #{mlp_forward.1} parent=11 // pred_check_branch
          %228 = sbr.rel (%p226) target = $region36
        $region35: #{mlp_forward.1} parent=11 // pred_region
          _
        $region36: #{mlp_forward.1} parent=11 // pred_fallthru
          _
      $region12: #{mlp_forward.1} parent=5 // pred_fallthru
        _
      %p229 = scmp.lt.s32.totalorder %s18, 2
      // Predicated region
      $region37: #{mlp_forward.1} parent=5 // pred_check
        %p230 = pneg %p229
      $region38: #{mlp_forward.1} parent=5 // pred_check_branch
        %232 = sbr.rel (%p230) target = $region40
      $region39: #{mlp_forward.1} parent=5 // pred_region
        // Predicated region
        $region41: #{mlp_forward.1} parent=39 // pred_check
          %p233 = pneg %p38
        $region42: #{mlp_forward.1} parent=39 // pred_check_branch
          %235 = sbr.rel (%p233) target = $region44
        $region43: #{mlp_forward.1} parent=39 // pred_region
          %s236 = smul.u32 64, %s18
          %p237 = scmp.lt.s32.totalorder %s236, 127
          %s238 = scalar_select %p237, %s236, 127
          %s239 = smul.addr %s238, 8
          %s240 = scalar_lea.vmem %s0, %s239
          %s241 = smul.u32 64, %s18
        $region44: #{mlp_forward.1} parent=39 // pred_fallthru
          _
      $region40: #{mlp_forward.1} parent=5 // pred_fallthru
        _
      %p242 = scmp.le.s32.totalorder 1, %s18
      %p243 = scmp.lt.s32.totalorder %s18, 3
      %p244 = pnand %p242, %p243
      %p245 = pneg %p244
      // Predicated region
      $region45: #{mlp_forward.1} parent=5 // pred_check
        _
      $region46: #{mlp_forward.1} parent=5 // pred_check_branch
        %247 = sbr.rel (%p244) target = $region48
      $region47: #{mlp_forward.1} parent=5 // pred_region
        %s248 = ssub.s32 %s18, 1
        %s249 = smul.u32 64, %s23
        %p250 = scmp.lt.s32.totalorder %s249, 127
        %s251 = scalar_select %p250, %s249, 127
        %s252 = smul.addr %s251, 8
        %s253 = scalar_lea.vmem %s0, %s252
        %p254 = pneg %p44
        %p255 = pneg %p41
        %p256 = pneg %p65
        %p257 = pneg %p62
        %p258 = pneg %p86
        %p259 = pneg %p83
        %p260 = pneg %p107
        %p261 = pneg %p104
        %p262 = pneg %p128
        %p263 = pneg %p125
        %p264 = pneg %p149
        %p265 = pneg %p146
        %p266 = pneg %p170
        %p267 = pneg %p167
        %p268 = pneg %p196
        %p269 = pneg %p193
        %s270 = sand.u32 %s183, 1
        %s271 = scalar_lea.sflag [#allocation4], %s270
        %s272 = sand.u32 %s183, 1
        %s273 = smul.addr %s272, 4
        %s274 = scalar_lea.vmem [#allocation3], %s273
        %s275 = smul.u32 64, %s23
        %p276 = scmp.lt.s32.totalorder %s275, 127
        %s277 = scalar_select %p276, %s275, 127
        %s278 = smul.addr %s277, 8
        %s279 = scalar_lea.vmem %s0, %s278
        %s280 = smul.u32 64, %s23
        %s281 = smul.u32 4, %s23
        %v282 = vld [vmem:[%s279] sm:$0xff]
        %v283 = vld [vmem:[%s279 + $0x8] sm:$0xff]
        %v284 = vld [vmem:[%s279 + $0x10] sm:$0xff]
        %v285 = vld [vmem:[%s279 + $0x18] sm:$0xff]
        %v286 = vld [vmem:[%s279 + $0x20] sm:$0xff]
        %v287 = vld [vmem:[%s279 + $0x28] sm:$0xff]
        %v288 = vld [vmem:[%s279 + $0x30] sm:$0xff]
        %v289 = vld [vmem:[%s279 + $0x38] sm:$0xff]
        %v290 = vld [vmem:[%s279 + $0x40] sm:$0xff]
        %v291 = vld [vmem:[%s279 + $0x48] sm:$0xff]
        %v292 = vld [vmem:[%s279 + $0x50] sm:$0xff]
        %v293 = vld [vmem:[%s279 + $0x58] sm:$0xff]
        %v294 = vld [vmem:[%s279 + $0x60] sm:$0xff]
        %v295 = vld [vmem:[%s279 + $0x68] sm:$0xff]
        %v296 = vld [vmem:[%s279 + $0x70] sm:$0xff]
        %v297 = vld [vmem:[%s279 + $0x78] sm:$0xff]
        %v298 = vld [vmem:[%s279 + $0x80] sm:$0xff]
        %v299 = vld [vmem:[%s279 + $0x88] sm:$0xff]
        %v300 = vld [vmem:[%s279 + $0x90] sm:$0xff]
        %v301 = vld [vmem:[%s279 + $0x98] sm:$0xff]
        %v302 = vld [vmem:[%s279 + $0xa0] sm:$0xff]
        %v303 = vld [vmem:[%s279 + $0xa8] sm:$0xff]
        %v304 = vld [vmem:[%s279 + $0xb0] sm:$0xff]
        %v305 = vld [vmem:[%s279 + $0xb8] sm:$0xff]
        %v306 = vld [vmem:[%s279 + $0xc0] sm:$0xff]
        %v307 = vld [vmem:[%s279 + $0xc8] sm:$0xff]
        %v308 = vld [vmem:[%s279 + $0xd0] sm:$0xff]
        %v309 = vld [vmem:[%s279 + $0xd8] sm:$0xff]
        %v310 = vld [vmem:[%s279 + $0xe0] sm:$0xff]
        %v311 = vld [vmem:[%s279 + $0xe8] sm:$0xff]
        %v312 = vld [vmem:[%s279 + $0xf0] sm:$0xff]
        %v313 = vld [vmem:[%s279 + $0xf8] sm:$0xff]
        %v314 = vld [vmem:[%s279 + $0x100] sm:$0xff]
        %v315 = vld [vmem:[%s279 + $0x108] sm:$0xff]
        %v316 = vld [vmem:[%s279 + $0x110] sm:$0xff]
        %v317 = vld [vmem:[%s279 + $0x118] sm:$0xff]
        %v318 = vld [vmem:[%s279 + $0x120] sm:$0xff]
        %v319 = vld [vmem:[%s279 + $0x128] sm:$0xff]
        %v320 = vld [vmem:[%s279 + $0x130] sm:$0xff]
        %v321 = vld [vmem:[%s279 + $0x138] sm:$0xff]
        %v322 = vld [vmem:[%s279 + $0x140] sm:$0xff]
        %v323 = vld [vmem:[%s279 + $0x148] sm:$0xff]
        %v324 = vld [vmem:[%s279 + $0x150] sm:$0xff]
        %v325 = vld [vmem:[%s279 + $0x158] sm:$0xff]
        %v326 = vld [vmem:[%s279 + $0x160] sm:$0xff]
        %v327 = vld [vmem:[%s279 + $0x168] sm:$0xff]
        %v328 = vld [vmem:[%s279 + $0x170] sm:$0xff]
        %v329 = vld [vmem:[%s279 + $0x178] sm:$0xff]
        %v330 = vld [vmem:[%s279 + $0x180] sm:$0xff]
        %v331 = vld [vmem:[%s279 + $0x188] sm:$0xff]
        %v332 = vld [vmem:[%s279 + $0x190] sm:$0xff]
        %v333 = vld [vmem:[%s279 + $0x198] sm:$0xff]
        %v334 = vld [vmem:[%s279 + $0x1a0] sm:$0xff]
        %v335 = vld [vmem:[%s279 + $0x1a8] sm:$0xff]
        %v336 = vld [vmem:[%s279 + $0x1b0] sm:$0xff]
        %v337 = vld [vmem:[%s279 + $0x1b8] sm:$0xff]
        %v338 = vld [vmem:[%s279 + $0x1c0] sm:$0xff]
        %v339 = vld [vmem:[%s279 + $0x1c8] sm:$0xff]
        %v340 = vld [vmem:[%s279 + $0x1d0] sm:$0xff]
        %v341 = vld [vmem:[%s279 + $0x1d8] sm:$0xff]
        %v342 = vld [vmem:[%s279 + $0x1e0] sm:$0xff]
        %v343 = vld [vmem:[%s279 + $0x1e8] sm:$0xff]
        %v344 = vld [vmem:[%s279 + $0x1f0] sm:$0xff]
        %v345 = vld [vmem:[%s279 + $0x1f8] sm:$0xff]
        %v346 = vld [vmem:[%s1] sm:$0xff]
        %v347 = vld [vmem:[%s1 + $0x8] sm:$0xff]
        %v348 = vld [vmem:[%s2] sm:$0x1]
        %v350 = vlaneseq
        %v351 = vshrl.u32 %v350, 7
        %v352 = vsub.s32 0, %v351
        %v353 = vrot.slane %v348, %v352
        %vm355 = vcmask 130048
        %v357 = vsel %vm355, %v282, 0
        %v360 = vsel %vm355, %v283, 0
        %v363 = vsel %vm355, %v284, 0
        %v366 = vsel %vm355, %v285, 0
        %v369 = vsel %vm355, %v286, 0
        %v372 = vsel %vm355, %v287, 0
        %v375 = vsel %vm355, %v288, 0
        %v378 = vsel %vm355, %v289, 0
        %v381 = vsel %vm355, %v290, 0
        %v384 = vsel %vm355, %v291, 0
        %v387 = vsel %vm355, %v292, 0
        %v390 = vsel %vm355, %v293, 0
        %v393 = vsel %vm355, %v294, 0
        %v396 = vsel %vm355, %v295, 0
        %v399 = vsel %vm355, %v296, 0
        %v402 = vsel %vm355, %v297, 0
        %v405 = vsel %vm355, %v298, 0
        %v408 = vsel %vm355, %v299, 0
        %v411 = vsel %vm355, %v300, 0
        %v414 = vsel %vm355, %v301, 0
        %v417 = vsel %vm355, %v302, 0
        %v420 = vsel %vm355, %v303, 0
        %v423 = vsel %vm355, %v304, 0
        %v426 = vsel %vm355, %v305, 0
        %v429 = vsel %vm355, %v306, 0
        %v432 = vsel %vm355, %v307, 0
        %v435 = vsel %vm355, %v308, 0
        %v438 = vsel %vm355, %v309, 0
        %v441 = vsel %vm355, %v310, 0
        %v444 = vsel %vm355, %v311, 0
        %v447 = vsel %vm355, %v312, 0
        %v450 = vsel %vm355, %v313, 0
        %v453 = vsel %vm355, %v314, 0
        %v456 = vsel %vm355, %v315, 0
        %v459 = vsel %vm355, %v316, 0
        %v462 = vsel %vm355, %v317, 0
        %v465 = vsel %vm355, %v318, 0
        %v468 = vsel %vm355, %v319, 0
        %v471 = vsel %vm355, %v320, 0
        %v474 = vsel %vm355, %v321, 0
        %v477 = vsel %vm355, %v322, 0
        %v480 = vsel %vm355, %v323, 0
        %v483 = vsel %vm355, %v324, 0
        %v486 = vsel %vm355, %v325, 0
        %v489 = vsel %vm355, %v326, 0
        %v492 = vsel %vm355, %v327, 0
        %v495 = vsel %vm355, %v328, 0
        %v498 = vsel %vm355, %v329, 0
        %v501 = vsel %vm355, %v330, 0
        %v504 = vsel %vm355, %v331, 0
        %v507 = vsel %vm355, %v332, 0
        %v510 = vsel %vm355, %v333, 0
        %v513 = vsel %vm355, %v334, 0
        %v516 = vsel %vm355, %v335, 0
        %v519 = vsel %vm355, %v336, 0
        %v522 = vsel %vm355, %v337, 0
        %v525 = vsel %vm355, %v338, 0
        %v528 = vsel %vm355, %v339, 0
        %v531 = vsel %vm355, %v340, 0
        %v534 = vsel %vm355, %v341, 0
        %v537 = vsel %vm355, %v342, 0
        %v540 = vsel %vm355, %v343, 0
        %v543 = vsel %vm355, %v344, 0
        %v546 = vsel %vm355, %v345, 0
        %548 = vmatprep.subr.mxu0 0.0
        %549 = vmatpush1.msra.mxu0 0.0
        %550 = vmatprep.subr.mxu0 0.0
        %551 = vmatpush1.msra.mxu0 0.0
        %552 = vmatprep.subr.mxu0 0.0
        %553 = vmatpush1.msra.mxu0 0.0
        %554 = vmatprep.subr.mxu0 0.0
        %555 = vmatpush1.msra.mxu0 0.0
        %556 = vmatprep.subr.mxu0 0.0
        %557 = vmatpush1.msra.mxu0 0.0
        %558 = vmatprep.subr.mxu0 0.0
        %559 = vmatpush1.msra.mxu0 0.0
        %560 = vmatprep.subr.mxu0 0.0
        %561 = vmatpush1.msra.mxu0 0.0
        %562 = vmatprep.subr.mxu0 0.0
        %563 = vmatpush1.msra.mxu0 0.0
        %564 = vmatprep.subr.mxu0 0.0
        %565 = vmatpush1.msra.mxu0 0.0
        %566 = vmatprep.subr.mxu0 0.0
        %567 = vmatpush1.msra.mxu0 0.0
        %568 = vmatprep.subr.mxu0 0.0
        %569 = vmatpush1.msra.mxu0 0.0
        %570 = vmatprep.subr.mxu0 0.0
        %571 = vmatpush1.msra.mxu0 0.0
        %572 = vmatprep.subr.mxu0 0.0
        %573 = vmatpush1.msra.mxu0 0.0
        %574 = vmatprep.subr.mxu0 0.0
        %575 = vmatpush1.msra.mxu0 0.0
        %576 = vmatprep.subr.mxu0 0.0
        %577 = vmatpush1.msra.mxu0 %v347
        %578 = vmatprep.subr.mxu0 0.0
        %579 = vmatpush1.msra.mxu0 %v346
        %580 = vmatprep.subr.mxu0 0.0
        %581 = vmatpush2.msra.mxu0 0.0
        %582 = vmatprep.subr.mxu0 0.0
        %583 = vmatpush2.msra.mxu0 0.0
        %584 = vmatprep.subr.mxu0 0.0
        %585 = vmatpush2.msra.mxu0 0.0
        %586 = vmatprep.subr.mxu0 0.0
        %587 = vmatpush2.msra.mxu0 0.0
        %588 = vmatprep.subr.mxu0 0.0
        %589 = vmatpush2.msra.mxu0 0.0
        %590 = vmatprep.subr.mxu0 0.0
        %591 = vmatpush2.msra.mxu0 0.0
        %592 = vmatprep.subr.mxu0 0.0
        %593 = vmatpush2.msra.mxu0 0.0
        %594 = vmatprep.subr.mxu0 0.0
        %595 = vmatpush2.msra.mxu0 0.0
        %596 = vmatprep.subr.mxu0 0.0
        %597 = vmatpush2.msra.mxu0 0.0
        %598 = vmatprep.subr.mxu0 0.0
        %599 = vmatpush2.msra.mxu0 0.0
        %600 = vmatprep.subr.mxu0 0.0
        %601 = vmatpush2.msra.mxu0 0.0
        %602 = vmatprep.subr.mxu0 0.0
        %603 = vmatpush2.msra.mxu0 0.0
        %604 = vmatprep.subr.mxu0 0.0
        %605 = vmatpush2.msra.mxu0 0.0
        %606 = vmatprep.subr.mxu0 0.0
        %607 = vmatpush2.msra.mxu0 0.0
        %608 = vmatprep.subr.mxu0 0.0
        %609 = vmatpush2.msra.mxu0 0.0
        %610 = vmatprep.subr.mxu0 0.0
        %611 = vmatpush2.msra.mxu0 0.0
        %612 = vmatprep.mubr.f32.mxu0 0.0
        %613 = vmatmul.mubr.f32.gmra.mxu0 %v357
        %v614 = vpop.f32.mrf.mxu0
        %v615 = vadd.f32 %v353, %v614
        %v616 = vpop.f32.mrf.mxu0
        %617 = vmatprep.mubr.f32.mxu0 0.0
        %618 = vmatmul.mubr.f32.gmra.mxu0 %v360
        %v619 = vpop.f32.mrf.mxu0
        %v620 = vadd.f32 %v353, %v619
        %v621 = vpop.f32.mrf.mxu0
        %622 = vmatprep.mubr.f32.mxu0 0.0
        %623 = vmatmul.mubr.f32.gmra.mxu0 %v363
        %v624 = vpop.f32.mrf.mxu0
        %v625 = vadd.f32 %v353, %v624
        %v626 = vpop.f32.mrf.mxu0
        %627 = vmatprep.mubr.f32.mxu0 0.0
        %628 = vmatmul.mubr.f32.gmra.mxu0 %v366
        %v629 = vpop.f32.mrf.mxu0
        %v630 = vadd.f32 %v353, %v629
        %v631 = vpop.f32.mrf.mxu0
        %632 = vmatprep.mubr.f32.mxu0 0.0
        %633 = vmatmul.mubr.f32.gmra.mxu0 %v369
        %v634 = vpop.f32.mrf.mxu0
        %v635 = vadd.f32 %v353, %v634
        %v636 = vpop.f32.mrf.mxu0
        %637 = vmatprep.mubr.f32.mxu0 0.0
        %638 = vmatmul.mubr.f32.gmra.mxu0 %v372
        %v639 = vpop.f32.mrf.mxu0
        %v640 = vadd.f32 %v353, %v639
        %v641 = vpop.f32.mrf.mxu0
        %642 = vmatprep.mubr.f32.mxu0 0.0
        %643 = vmatmul.mubr.f32.gmra.mxu0 %v375
        %v644 = vpop.f32.mrf.mxu0
        %v645 = vadd.f32 %v353, %v644
        %v646 = vpop.f32.mrf.mxu0
        %647 = vmatprep.mubr.f32.mxu0 0.0
        %648 = vmatmul.mubr.f32.gmra.mxu0 %v378
        %v649 = vpop.f32.mrf.mxu0
        %v650 = vadd.f32 %v353, %v649
        %v651 = vpop.f32.mrf.mxu0
        %652 = vmatprep.mubr.f32.mxu0 0.0
        %653 = vmatmul.mubr.f32.gmra.mxu0 %v381
        %v654 = vpop.f32.mrf.mxu0
        %v655 = vadd.f32 %v353, %v654
        %v656 = vpop.f32.mrf.mxu0
        %657 = vmatprep.mubr.f32.mxu0 0.0
        %658 = vmatmul.mubr.f32.gmra.mxu0 %v384
        %v659 = vpop.f32.mrf.mxu0
        %v660 = vadd.f32 %v353, %v659
        %v661 = vpop.f32.mrf.mxu0
        %662 = vmatprep.mubr.f32.mxu0 0.0
        %663 = vmatmul.mubr.f32.gmra.mxu0 %v387
        %v664 = vpop.f32.mrf.mxu0
        %v665 = vadd.f32 %v353, %v664
        %v666 = vpop.f32.mrf.mxu0
        %667 = vmatprep.mubr.f32.mxu0 0.0
        %668 = vmatmul.mubr.f32.gmra.mxu0 %v390
        %v669 = vpop.f32.mrf.mxu0
        %v670 = vadd.f32 %v353, %v669
        %v671 = vpop.f32.mrf.mxu0
        %672 = vmatprep.mubr.f32.mxu0 0.0
        %673 = vmatmul.mubr.f32.gmra.mxu0 %v393
        %v674 = vpop.f32.mrf.mxu0
        %v675 = vadd.f32 %v353, %v674
        %v676 = vpop.f32.mrf.mxu0
        %677 = vmatprep.mubr.f32.mxu0 0.0
        %678 = vmatmul.mubr.f32.gmra.mxu0 %v396
        %v679 = vpop.f32.mrf.mxu0
        %v680 = vadd.f32 %v353, %v679
        %v681 = vpop.f32.mrf.mxu0
        %682 = vmatprep.mubr.f32.mxu0 0.0
        %683 = vmatmul.mubr.f32.gmra.mxu0 %v399
        %v684 = vpop.f32.mrf.mxu0
        %v685 = vadd.f32 %v353, %v684
        %v686 = vpop.f32.mrf.mxu0
        %687 = vmatprep.mubr.f32.mxu0 0.0
        %688 = vmatmul.mubr.f32.gmra.mxu0 %v402
        %v689 = vpop.f32.mrf.mxu0
        %v690 = vadd.f32 %v353, %v689
        %v691 = vpop.f32.mrf.mxu0
        %692 = vmatprep.mubr.f32.mxu0 0.0
        %693 = vmatmul.mubr.f32.gmra.mxu0 %v405
        %v694 = vpop.f32.mrf.mxu0
        %v695 = vadd.f32 %v353, %v694
        %v696 = vpop.f32.mrf.mxu0
        %697 = vmatprep.mubr.f32.mxu0 0.0
        %698 = vmatmul.mubr.f32.gmra.mxu0 %v408
        %v699 = vpop.f32.mrf.mxu0
        %v700 = vadd.f32 %v353, %v699
        %v701 = vpop.f32.mrf.mxu0
        %702 = vmatprep.mubr.f32.mxu0 0.0
        %703 = vmatmul.mubr.f32.gmra.mxu0 %v411
        %v704 = vpop.f32.mrf.mxu0
        %v705 = vadd.f32 %v353, %v704
        %v706 = vpop.f32.mrf.mxu0
        %707 = vmatprep.mubr.f32.mxu0 0.0
        %708 = vmatmul.mubr.f32.gmra.mxu0 %v414
        %v709 = vpop.f32.mrf.mxu0
        %v710 = vadd.f32 %v353, %v709
        %v711 = vpop.f32.mrf.mxu0
        %712 = vmatprep.mubr.f32.mxu0 0.0
        %713 = vmatmul.mubr.f32.gmra.mxu0 %v417
        %v714 = vpop.f32.mrf.mxu0
        %v715 = vadd.f32 %v353, %v714
        %v716 = vpop.f32.mrf.mxu0
        %717 = vmatprep.mubr.f32.mxu0 0.0
        %718 = vmatmul.mubr.f32.gmra.mxu0 %v420
        %v719 = vpop.f32.mrf.mxu0
        %v720 = vadd.f32 %v353, %v719
        %v721 = vpop.f32.mrf.mxu0
        %722 = vmatprep.mubr.f32.mxu0 0.0
        %723 = vmatmul.mubr.f32.gmra.mxu0 %v423
        %v724 = vpop.f32.mrf.mxu0
        %v725 = vadd.f32 %v353, %v724
        %v726 = vpop.f32.mrf.mxu0
        %727 = vmatprep.mubr.f32.mxu0 0.0
        %728 = vmatmul.mubr.f32.gmra.mxu0 %v426
        %v729 = vpop.f32.mrf.mxu0
        %v730 = vadd.f32 %v353, %v729
        %v731 = vpop.f32.mrf.mxu0
        %732 = vmatprep.mubr.f32.mxu0 0.0
        %733 = vmatmul.mubr.f32.gmra.mxu0 %v429
        %v734 = vpop.f32.mrf.mxu0
        %v735 = vadd.f32 %v353, %v734
        %v736 = vpop.f32.mrf.mxu0
        %737 = vmatprep.mubr.f32.mxu0 0.0
        %738 = vmatmul.mubr.f32.gmra.mxu0 %v432
        %v739 = vpop.f32.mrf.mxu0
        %v740 = vadd.f32 %v353, %v739
        %v741 = vpop.f32.mrf.mxu0
        %742 = vmatprep.mubr.f32.mxu0 0.0
        %743 = vmatmul.mubr.f32.gmra.mxu0 %v435
        %v744 = vpop.f32.mrf.mxu0
        %v745 = vadd.f32 %v353, %v744
        %v746 = vpop.f32.mrf.mxu0
        %747 = vmatprep.mubr.f32.mxu0 0.0
        %748 = vmatmul.mubr.f32.gmra.mxu0 %v438
        %v749 = vpop.f32.mrf.mxu0
        %v750 = vadd.f32 %v353, %v749
        %v751 = vpop.f32.mrf.mxu0
        %752 = vmatprep.mubr.f32.mxu0 0.0
        %753 = vmatmul.mubr.f32.gmra.mxu0 %v441
        %v754 = vpop.f32.mrf.mxu0
        %v755 = vadd.f32 %v353, %v754
        %v756 = vpop.f32.mrf.mxu0
        %757 = vmatprep.mubr.f32.mxu0 0.0
        %758 = vmatmul.mubr.f32.gmra.mxu0 %v444
        %v759 = vpop.f32.mrf.mxu0
        %v760 = vadd.f32 %v353, %v759
        %v761 = vpop.f32.mrf.mxu0
        %762 = vmatprep.mubr.f32.mxu0 0.0
        %763 = vmatmul.mubr.f32.gmra.mxu0 %v447
        %v764 = vpop.f32.mrf.mxu0
        %v765 = vadd.f32 %v353, %v764
        %v766 = vpop.f32.mrf.mxu0
        %767 = vmatprep.mubr.f32.mxu0 0.0
        %768 = vmatmul.mubr.f32.gmra.mxu0 %v450
        %v769 = vpop.f32.mrf.mxu0
        %v770 = vadd.f32 %v353, %v769
        %v771 = vpop.f32.mrf.mxu0
        %772 = vmatprep.mubr.f32.mxu0 0.0
        %773 = vmatmul.mubr.f32.gmra.mxu0 %v453
        %v774 = vpop.f32.mrf.mxu0
        %v775 = vadd.f32 %v353, %v774
        %v776 = vpop.f32.mrf.mxu0
        %777 = vmatprep.mubr.f32.mxu0 0.0
        %778 = vmatmul.mubr.f32.gmra.mxu0 %v456
        %v779 = vpop.f32.mrf.mxu0
        %v780 = vadd.f32 %v353, %v779
        %v781 = vpop.f32.mrf.mxu0
        %782 = vmatprep.mubr.f32.mxu0 0.0
        %783 = vmatmul.mubr.f32.gmra.mxu0 %v459
        %v784 = vpop.f32.mrf.mxu0
        %v785 = vadd.f32 %v353, %v784
        %v786 = vpop.f32.mrf.mxu0
        %787 = vmatprep.mubr.f32.mxu0 0.0
        %788 = vmatmul.mubr.f32.gmra.mxu0 %v462
        %v789 = vpop.f32.mrf.mxu0
        %v790 = vadd.f32 %v353, %v789
        %v791 = vpop.f32.mrf.mxu0
        %792 = vmatprep.mubr.f32.mxu0 0.0
        %793 = vmatmul.mubr.f32.gmra.mxu0 %v465
        %v794 = vpop.f32.mrf.mxu0
        %v795 = vadd.f32 %v353, %v794
        %v796 = vpop.f32.mrf.mxu0
        %797 = vmatprep.mubr.f32.mxu0 0.0
        %798 = vmatmul.mubr.f32.gmra.mxu0 %v468
        %v799 = vpop.f32.mrf.mxu0
        %v800 = vadd.f32 %v353, %v799
        %v801 = vpop.f32.mrf.mxu0
        %802 = vmatprep.mubr.f32.mxu0 0.0
        %803 = vmatmul.mubr.f32.gmra.mxu0 %v471
        %v804 = vpop.f32.mrf.mxu0
        %v805 = vadd.f32 %v353, %v804
        %v806 = vpop.f32.mrf.mxu0
        %807 = vmatprep.mubr.f32.mxu0 0.0
        %808 = vmatmul.mubr.f32.gmra.mxu0 %v474
        %v809 = vpop.f32.mrf.mxu0
        %v810 = vadd.f32 %v353, %v809
        %v811 = vpop.f32.mrf.mxu0
        %812 = vmatprep.mubr.f32.mxu0 0.0
        %813 = vmatmul.mubr.f32.gmra.mxu0 %v477
        %v814 = vpop.f32.mrf.mxu0
        %v815 = vadd.f32 %v353, %v814
        %v816 = vpop.f32.mrf.mxu0
        %817 = vmatprep.mubr.f32.mxu0 0.0
        %818 = vmatmul.mubr.f32.gmra.mxu0 %v480
        %v819 = vpop.f32.mrf.mxu0
        %v820 = vadd.f32 %v353, %v819
        %v821 = vpop.f32.mrf.mxu0
        %822 = vmatprep.mubr.f32.mxu0 0.0
        %823 = vmatmul.mubr.f32.gmra.mxu0 %v483
        %v824 = vpop.f32.mrf.mxu0
        %v825 = vadd.f32 %v353, %v824
        %v826 = vpop.f32.mrf.mxu0
        %827 = vmatprep.mubr.f32.mxu0 0.0
        %828 = vmatmul.mubr.f32.gmra.mxu0 %v486
        %v829 = vpop.f32.mrf.mxu0
        %v830 = vadd.f32 %v353, %v829
        %v831 = vpop.f32.mrf.mxu0
        %832 = vmatprep.mubr.f32.mxu0 0.0
        %833 = vmatmul.mubr.f32.gmra.mxu0 %v489
        %v834 = vpop.f32.mrf.mxu0
        %v835 = vadd.f32 %v353, %v834
        %v836 = vpop.f32.mrf.mxu0
        %837 = vmatprep.mubr.f32.mxu0 0.0
        %838 = vmatmul.mubr.f32.gmra.mxu0 %v492
        %v839 = vpop.f32.mrf.mxu0
        %v840 = vadd.f32 %v353, %v839
        %v841 = vpop.f32.mrf.mxu0
        %842 = vmatprep.mubr.f32.mxu0 0.0
        %843 = vmatmul.mubr.f32.gmra.mxu0 %v495
        %v844 = vpop.f32.mrf.mxu0
        %v845 = vadd.f32 %v353, %v844
        %v846 = vpop.f32.mrf.mxu0
        %847 = vmatprep.mubr.f32.mxu0 0.0
        %848 = vmatmul.mubr.f32.gmra.mxu0 %v498
        %v849 = vpop.f32.mrf.mxu0
        %v850 = vadd.f32 %v353, %v849
        %v851 = vpop.f32.mrf.mxu0
        %852 = vmatprep.mubr.f32.mxu0 0.0
        %853 = vmatmul.mubr.f32.gmra.mxu0 %v501
        %v854 = vpop.f32.mrf.mxu0
        %v855 = vadd.f32 %v353, %v854
        %v856 = vpop.f32.mrf.mxu0
        %857 = vmatprep.mubr.f32.mxu0 0.0
        %858 = vmatmul.mubr.f32.gmra.mxu0 %v504
        %v859 = vpop.f32.mrf.mxu0
        %v860 = vadd.f32 %v353, %v859
        %v861 = vpop.f32.mrf.mxu0
        %862 = vmatprep.mubr.f32.mxu0 0.0
        %863 = vmatmul.mubr.f32.gmra.mxu0 %v507
        %v864 = vpop.f32.mrf.mxu0
        %v865 = vadd.f32 %v353, %v864
        %v866 = vpop.f32.mrf.mxu0
        %867 = vmatprep.mubr.f32.mxu0 0.0
        %868 = vmatmul.mubr.f32.gmra.mxu0 %v510
        %v869 = vpop.f32.mrf.mxu0
        %v870 = vadd.f32 %v353, %v869
        %v871 = vpop.f32.mrf.mxu0
        %872 = vmatprep.mubr.f32.mxu0 0.0
        %873 = vmatmul.mubr.f32.gmra.mxu0 %v513
        %v874 = vpop.f32.mrf.mxu0
        %v875 = vadd.f32 %v353, %v874
        %v876 = vpop.f32.mrf.mxu0
        %877 = vmatprep.mubr.f32.mxu0 0.0
        %878 = vmatmul.mubr.f32.gmra.mxu0 %v516
        %v879 = vpop.f32.mrf.mxu0
        %v880 = vadd.f32 %v353, %v879
        %v881 = vpop.f32.mrf.mxu0
        %882 = vmatprep.mubr.f32.mxu0 0.0
        %883 = vmatmul.mubr.f32.gmra.mxu0 %v519
        %v884 = vpop.f32.mrf.mxu0
        %v885 = vadd.f32 %v353, %v884
        %v886 = vpop.f32.mrf.mxu0
        %887 = vmatprep.mubr.f32.mxu0 0.0
        %888 = vmatmul.mubr.f32.gmra.mxu0 %v522
        %v889 = vpop.f32.mrf.mxu0
        %v890 = vadd.f32 %v353, %v889
        %v891 = vpop.f32.mrf.mxu0
        %892 = vmatprep.mubr.f32.mxu0 0.0
        %893 = vmatmul.mubr.f32.gmra.mxu0 %v525
        %v894 = vpop.f32.mrf.mxu0
        %v895 = vadd.f32 %v353, %v894
        %v896 = vpop.f32.mrf.mxu0
        %897 = vmatprep.mubr.f32.mxu0 0.0
        %898 = vmatmul.mubr.f32.gmra.mxu0 %v528
        %v899 = vpop.f32.mrf.mxu0
        %v900 = vadd.f32 %v353, %v899
        %v901 = vpop.f32.mrf.mxu0
        %902 = vmatprep.mubr.f32.mxu0 0.0
        %903 = vmatmul.mubr.f32.gmra.mxu0 %v531
        %v904 = vpop.f32.mrf.mxu0
        %v905 = vadd.f32 %v353, %v904
        %v906 = vpop.f32.mrf.mxu0
        %907 = vmatprep.mubr.f32.mxu0 0.0
        %908 = vmatmul.mubr.f32.gmra.mxu0 %v534
        %v909 = vpop.f32.mrf.mxu0
        %v910 = vadd.f32 %v353, %v909
        %v911 = vpop.f32.mrf.mxu0
        %912 = vmatprep.mubr.f32.mxu0 0.0
        %913 = vmatmul.mubr.f32.gmra.mxu0 %v537
        %v914 = vpop.f32.mrf.mxu0
        %v915 = vadd.f32 %v353, %v914
        %v916 = vpop.f32.mrf.mxu0
        %917 = vmatprep.mubr.f32.mxu0 0.0
        %918 = vmatmul.mubr.f32.gmra.mxu0 %v540
        %v919 = vpop.f32.mrf.mxu0
        %v920 = vadd.f32 %v353, %v919
        %v921 = vpop.f32.mrf.mxu0
        %922 = vmatprep.mubr.f32.mxu0 0.0
        %923 = vmatmul.mubr.f32.gmra.mxu0 %v543
        %v924 = vpop.f32.mrf.mxu0
        %v925 = vadd.f32 %v353, %v924
        %v926 = vpop.f32.mrf.mxu0
        %927 = vmatprep.mubr.f32.mxu0 0.0
        %928 = vmatmul.mubr.f32.gmra.mxu0 %v546
        %v929 = vpop.f32.mrf.mxu0
        %v930 = vadd.f32 %v353, %v929
        %v931 = vpop.f32.mrf.mxu0
        %932 = vdwg.mxu0
        %v933 = vmax.f32 %v615, 0.0
        %v934 = vmax.f32 %v620, 0.0
        %v935 = vmax.f32 %v625, 0.0
        %v936 = vmax.f32 %v630, 0.0
        %v937 = vmax.f32 %v635, 0.0
        %v938 = vmax.f32 %v640, 0.0
        %v939 = vmax.f32 %v645, 0.0
        %v940 = vmax.f32 %v650, 0.0
        %v941 = vmax.f32 %v655, 0.0
        %v942 = vmax.f32 %v660, 0.0
        %v943 = vmax.f32 %v665, 0.0
        %v944 = vmax.f32 %v670, 0.0
        %v945 = vmax.f32 %v675, 0.0
        %v946 = vmax.f32 %v680, 0.0
        %v947 = vmax.f32 %v685, 0.0
        %v948 = vmax.f32 %v690, 0.0
        %v949 = vmax.f32 %v695, 0.0
        %v950 = vmax.f32 %v700, 0.0
        %v951 = vmax.f32 %v705, 0.0
        %v952 = vmax.f32 %v710, 0.0
        %v953 = vmax.f32 %v715, 0.0
        %v954 = vmax.f32 %v720, 0.0
        %v955 = vmax.f32 %v725, 0.0
        %v956 = vmax.f32 %v730, 0.0
        %v957 = vmax.f32 %v735, 0.0
        %v958 = vmax.f32 %v740, 0.0
        %v959 = vmax.f32 %v745, 0.0
        %v960 = vmax.f32 %v750, 0.0
        %v961 = vmax.f32 %v755, 0.0
        %v962 = vmax.f32 %v760, 0.0
        %v963 = vmax.f32 %v765, 0.0
        %v964 = vmax.f32 %v770, 0.0
        %v965 = vmax.f32 %v775, 0.0
        %v966 = vmax.f32 %v780, 0.0
        %v967 = vmax.f32 %v785, 0.0
        %v968 = vmax.f32 %v790, 0.0
        %v969 = vmax.f32 %v795, 0.0
        %v970 = vmax.f32 %v800, 0.0
        %v971 = vmax.f32 %v805, 0.0
        %v972 = vmax.f32 %v810, 0.0
        %v973 = vmax.f32 %v815, 0.0
        %v974 = vmax.f32 %v820, 0.0
        %v975 = vmax.f32 %v825, 0.0
        %v976 = vmax.f32 %v830, 0.0
        %v977 = vmax.f32 %v835, 0.0
        %v978 = vmax.f32 %v840, 0.0
        %v979 = vmax.f32 %v845, 0.0
        %v980 = vmax.f32 %v850, 0.0
        %v981 = vmax.f32 %v855, 0.0
        %v982 = vmax.f32 %v860, 0.0
        %v983 = vmax.f32 %v865, 0.0
        %v984 = vmax.f32 %v870, 0.0
        %v985 = vmax.f32 %v875, 0.0
        %v986 = vmax.f32 %v880, 0.0
        %v987 = vmax.f32 %v885, 0.0
        %v988 = vmax.f32 %v890, 0.0
        %v989 = vmax.f32 %v895, 0.0
        %v990 = vmax.f32 %v900, 0.0
        %v991 = vmax.f32 %v905, 0.0
        %v992 = vmax.f32 %v910, 0.0
        %v993 = vmax.f32 %v915, 0.0
        %v994 = vmax.f32 %v920, 0.0
        %v995 = vmax.f32 %v925, 0.0
        %v996 = vmax.f32 %v930, 0.0
        %v997 = vld [vmem:[%s3] sm:$0xff]
        %v998 = vld [vmem:[%s3 + $0x8] sm:$0xff]
        %v999 = vld [vmem:[%s3 + $0x10] sm:$0xff]
        %v1000 = vld [vmem:[%s3 + $0x18] sm:$0xff]
        %v1001 = vld [vmem:[%s4] sm:$0x1]
        %v1003 = vlaneseq
        %v1004 = vshrl.u32 %v1003, 7
        %v1005 = vsub.s32 0, %v1004
        %v1006 = vrot.slane %v1001, %v1005
        %vm1008 = vcmask 261120
        %v1010 = vsel %vm1008, %v933, 0
        %v1013 = vsel %vm1008, %v934, 0
        %v1016 = vsel %vm1008, %v935, 0
        %v1019 = vsel %vm1008, %v936, 0
        %v1022 = vsel %vm1008, %v937, 0
        %v1025 = vsel %vm1008, %v938, 0
        %v1028 = vsel %vm1008, %v939, 0
        %v1031 = vsel %vm1008, %v940, 0
        %v1034 = vsel %vm1008, %v941, 0
        %v1037 = vsel %vm1008, %v942, 0
        %v1040 = vsel %vm1008, %v943, 0
        %v1043 = vsel %vm1008, %v944, 0
        %v1046 = vsel %vm1008, %v945, 0
        %v1049 = vsel %vm1008, %v946, 0
        %v1052 = vsel %vm1008, %v947, 0
        %v1055 = vsel %vm1008, %v948, 0
        %v1058 = vsel %vm1008, %v949, 0
        %v1061 = vsel %vm1008, %v950, 0
        %v1064 = vsel %vm1008, %v951, 0
        %v1067 = vsel %vm1008, %v952, 0
        %v1070 = vsel %vm1008, %v953, 0
        %v1073 = vsel %vm1008, %v954, 0
        %v1076 = vsel %vm1008, %v955, 0
        %v1079 = vsel %vm1008, %v956, 0
        %v1082 = vsel %vm1008, %v957, 0
        %v1085 = vsel %vm1008, %v958, 0
        %v1088 = vsel %vm1008, %v959, 0
        %v1091 = vsel %vm1008, %v960, 0
        %v1094 = vsel %vm1008, %v961, 0
        %v1097 = vsel %vm1008, %v962, 0
        %v1100 = vsel %vm1008, %v963, 0
        %v1103 = vsel %vm1008, %v964, 0
        %v1106 = vsel %vm1008, %v965, 0
        %v1109 = vsel %vm1008, %v966, 0
        %v1112 = vsel %vm1008, %v967, 0
        %v1115 = vsel %vm1008, %v968, 0
        %v1118 = vsel %vm1008, %v969, 0
        %v1121 = vsel %vm1008, %v970, 0
        %v1124 = vsel %vm1008, %v971, 0
        %v1127 = vsel %vm1008, %v972, 0
        %v1130 = vsel %vm1008, %v973, 0
        %v1133 = vsel %vm1008, %v974, 0
        %v1136 = vsel %vm1008, %v975, 0
        %v1139 = vsel %vm1008, %v976, 0
        %v1142 = vsel %vm1008, %v977, 0
        %v1145 = vsel %vm1008, %v978, 0
        %v1148 = vsel %vm1008, %v979, 0
        %v1151 = vsel %vm1008, %v980, 0
        %v1154 = vsel %vm1008, %v981, 0
        %v1157 = vsel %vm1008, %v982, 0
        %v1160 = vsel %vm1008, %v983, 0
        %v1163 = vsel %vm1008, %v984, 0
        %v1166 = vsel %vm1008, %v985, 0
        %v1169 = vsel %vm1008, %v986, 0
        %v1172 = vsel %vm1008, %v987, 0
        %v1175 = vsel %vm1008, %v988, 0
        %v1178 = vsel %vm1008, %v989, 0
        %v1181 = vsel %vm1008, %v990, 0
        %v1184 = vsel %vm1008, %v991, 0
        %v1187 = vsel %vm1008, %v992, 0
        %v1190 = vsel %vm1008, %v993, 0
        %v1193 = vsel %vm1008, %v994, 0
        %v1196 = vsel %vm1008, %v995, 0
        %v1199 = vsel %vm1008, %v996, 0
        %1201 = vmatprep.subr.mxu0 0.0
        %1202 = vmatpush1.msra.mxu0 0.0
        %1203 = vmatprep.subr.mxu0 0.0
        %1204 = vmatpush1.msra.mxu0 0.0
        %1205 = vmatprep.subr.mxu0 0.0
        %1206 = vmatpush1.msra.mxu0 0.0
        %1207 = vmatprep.subr.mxu0 0.0
        %1208 = vmatpush1.msra.mxu0 0.0
        %1209 = vmatprep.subr.mxu0 0.0
        %1210 = vmatpush1.msra.mxu0 0.0
        %1211 = vmatprep.subr.mxu0 0.0
        %1212 = vmatpush1.msra.mxu0 0.0
        %1213 = vmatprep.subr.mxu0 0.0
        %1214 = vmatpush1.msra.mxu0 0.0
        %1215 = vmatprep.subr.mxu0 0.0
        %1216 = vmatpush1.msra.mxu0 0.0
        %1217 = vmatprep.subr.mxu0 0.0
        %1218 = vmatpush1.msra.mxu0 0.0
        %1219 = vmatprep.subr.mxu0 0.0
        %1220 = vmatpush1.msra.mxu0 0.0
        %1221 = vmatprep.subr.mxu0 0.0
        %1222 = vmatpush1.msra.mxu0 0.0
        %1223 = vmatprep.subr.mxu0 0.0
        %1224 = vmatpush1.msra.mxu0 0.0
        %1225 = vmatprep.subr.mxu0 0.0
        %1226 = vmatpush1.msra.mxu0 %v1000
        %1227 = vmatprep.subr.mxu0 0.0
        %1228 = vmatpush1.msra.mxu0 %v999
        %1229 = vmatprep.subr.mxu0 0.0
        %1230 = vmatpush1.msra.mxu0 %v998
        %1231 = vmatprep.subr.mxu0 0.0
        %1232 = vmatpush1.msra.mxu0 %v997
        %1233 = vmatprep.subr.mxu0 0.0
        %1234 = vmatpush2.msra.mxu0 0.0
        %1235 = vmatprep.subr.mxu0 0.0
        %1236 = vmatpush2.msra.mxu0 0.0
        %1237 = vmatprep.subr.mxu0 0.0
        %1238 = vmatpush2.msra.mxu0 0.0
        %1239 = vmatprep.subr.mxu0 0.0
        %1240 = vmatpush2.msra.mxu0 0.0
        %1241 = vmatprep.subr.mxu0 0.0
        %1242 = vmatpush2.msra.mxu0 0.0
        %1243 = vmatprep.subr.mxu0 0.0
        %1244 = vmatpush2.msra.mxu0 0.0
        %1245 = vmatprep.subr.mxu0 0.0
        %1246 = vmatpush2.msra.mxu0 0.0
        %1247 = vmatprep.subr.mxu0 0.0
        %1248 = vmatpush2.msra.mxu0 0.0
        %1249 = vmatprep.subr.mxu0 0.0
        %1250 = vmatpush2.msra.mxu0 0.0
        %1251 = vmatprep.subr.mxu0 0.0
        %1252 = vmatpush2.msra.mxu0 0.0
        %1253 = vmatprep.subr.mxu0 0.0
        %1254 = vmatpush2.msra.mxu0 0.0
        %1255 = vmatprep.subr.mxu0 0.0
        %1256 = vmatpush2.msra.mxu0 0.0
        %1257 = vmatprep.subr.mxu0 0.0
        %1258 = vmatpush2.msra.mxu0 0.0
        %1259 = vmatprep.subr.mxu0 0.0
        %1260 = vmatpush2.msra.mxu0 0.0
        %1261 = vmatprep.subr.mxu0 0.0
        %1262 = vmatpush2.msra.mxu0 0.0
        %1263 = vmatprep.subr.mxu0 0.0
        %1264 = vmatpush2.msra.mxu0 0.0
        %1265 = vmatprep.mubr.f32.mxu0 0.0
        %1266 = vmatmul.mubr.f32.gmra.mxu0 %v1010
        %v1267 = vpop.f32.mrf.mxu0
        %v1268 = vadd.f32 %v1006, %v1267
        %v1269 = vpop.f32.mrf.mxu0
        %1270 = vmatprep.mubr.f32.mxu0 0.0
        %1271 = vmatmul.mubr.f32.gmra.mxu0 %v1013
        %v1272 = vpop.f32.mrf.mxu0
        %v1273 = vadd.f32 %v1006, %v1272
        %v1274 = vpop.f32.mrf.mxu0
        %1275 = vmatprep.mubr.f32.mxu0 0.0
        %1276 = vmatmul.mubr.f32.gmra.mxu0 %v1016
        %v1277 = vpop.f32.mrf.mxu0
        %v1278 = vadd.f32 %v1006, %v1277
        %v1279 = vpop.f32.mrf.mxu0
        %1280 = vmatprep.mubr.f32.mxu0 0.0
        %1281 = vmatmul.mubr.f32.gmra.mxu0 %v1019
        %v1282 = vpop.f32.mrf.mxu0
        %v1283 = vadd.f32 %v1006, %v1282
        %v1284 = vpop.f32.mrf.mxu0
        %1285 = vmatprep.mubr.f32.mxu0 0.0
        %1286 = vmatmul.mubr.f32.gmra.mxu0 %v1022
        %v1287 = vpop.f32.mrf.mxu0
        %v1288 = vadd.f32 %v1006, %v1287
        %v1289 = vpop.f32.mrf.mxu0
        %1290 = vmatprep.mubr.f32.mxu0 0.0
        %1291 = vmatmul.mubr.f32.gmra.mxu0 %v1025
        %v1292 = vpop.f32.mrf.mxu0
        %v1293 = vadd.f32 %v1006, %v1292
        %v1294 = vpop.f32.mrf.mxu0
        %1295 = vmatprep.mubr.f32.mxu0 0.0
        %1296 = vmatmul.mubr.f32.gmra.mxu0 %v1028
        %v1297 = vpop.f32.mrf.mxu0
        %v1298 = vadd.f32 %v1006, %v1297
        %v1299 = vpop.f32.mrf.mxu0
        %1300 = vmatprep.mubr.f32.mxu0 0.0
        %1301 = vmatmul.mubr.f32.gmra.mxu0 %v1031
        %v1302 = vpop.f32.mrf.mxu0
        %v1303 = vadd.f32 %v1006, %v1302
        %v1304 = vpop.f32.mrf.mxu0
        %1305 = vmatprep.mubr.f32.mxu0 0.0
        %1306 = vmatmul.mubr.f32.gmra.mxu0 %v1034
        %v1307 = vpop.f32.mrf.mxu0
        %v1308 = vadd.f32 %v1006, %v1307
        %v1309 = vpop.f32.mrf.mxu0
        %1310 = vmatprep.mubr.f32.mxu0 0.0
        %1311 = vmatmul.mubr.f32.gmra.mxu0 %v1037
        %v1312 = vpop.f32.mrf.mxu0
        %v1313 = vadd.f32 %v1006, %v1312
        %v1314 = vpop.f32.mrf.mxu0
        %1315 = vmatprep.mubr.f32.mxu0 0.0
        %1316 = vmatmul.mubr.f32.gmra.mxu0 %v1040
        %v1317 = vpop.f32.mrf.mxu0
        %v1318 = vadd.f32 %v1006, %v1317
        %v1319 = vpop.f32.mrf.mxu0
        %1320 = vmatprep.mubr.f32.mxu0 0.0
        %1321 = vmatmul.mubr.f32.gmra.mxu0 %v1043
        %v1322 = vpop.f32.mrf.mxu0
        %v1323 = vadd.f32 %v1006, %v1322
        %v1324 = vpop.f32.mrf.mxu0
        %1325 = vmatprep.mubr.f32.mxu0 0.0
        %1326 = vmatmul.mubr.f32.gmra.mxu0 %v1046
        %v1327 = vpop.f32.mrf.mxu0
        %v1328 = vadd.f32 %v1006, %v1327
        %v1329 = vpop.f32.mrf.mxu0
        %1330 = vmatprep.mubr.f32.mxu0 0.0
        %1331 = vmatmul.mubr.f32.gmra.mxu0 %v1049
        %v1332 = vpop.f32.mrf.mxu0
        %v1333 = vadd.f32 %v1006, %v1332
        %v1334 = vpop.f32.mrf.mxu0
        %1335 = vmatprep.mubr.f32.mxu0 0.0
        %1336 = vmatmul.mubr.f32.gmra.mxu0 %v1052
        %v1337 = vpop.f32.mrf.mxu0
        %v1338 = vadd.f32 %v1006, %v1337
        %v1339 = vpop.f32.mrf.mxu0
        %1340 = vmatprep.mubr.f32.mxu0 0.0
        %1341 = vmatmul.mubr.f32.gmra.mxu0 %v1055
        %v1342 = vpop.f32.mrf.mxu0
        %v1343 = vadd.f32 %v1006, %v1342
        %v1344 = vpop.f32.mrf.mxu0
        %1345 = vmatprep.mubr.f32.mxu0 0.0
        %1346 = vmatmul.mubr.f32.gmra.mxu0 %v1058
        %v1347 = vpop.f32.mrf.mxu0
        %v1348 = vadd.f32 %v1006, %v1347
        %v1349 = vpop.f32.mrf.mxu0
        %1350 = vmatprep.mubr.f32.mxu0 0.0
        %1351 = vmatmul.mubr.f32.gmra.mxu0 %v1061
        %v1352 = vpop.f32.mrf.mxu0
        %v1353 = vadd.f32 %v1006, %v1352
        %v1354 = vpop.f32.mrf.mxu0
        %1355 = vmatprep.mubr.f32.mxu0 0.0
        %1356 = vmatmul.mubr.f32.gmra.mxu0 %v1064
        %v1357 = vpop.f32.mrf.mxu0
        %v1358 = vadd.f32 %v1006, %v1357
        %v1359 = vpop.f32.mrf.mxu0
        %1360 = vmatprep.mubr.f32.mxu0 0.0
        %1361 = vmatmul.mubr.f32.gmra.mxu0 %v1067
        %v1362 = vpop.f32.mrf.mxu0
        %v1363 = vadd.f32 %v1006, %v1362
        %v1364 = vpop.f32.mrf.mxu0
        %1365 = vmatprep.mubr.f32.mxu0 0.0
        %1366 = vmatmul.mubr.f32.gmra.mxu0 %v1070
        %v1367 = vpop.f32.mrf.mxu0
        %v1368 = vadd.f32 %v1006, %v1367
        %v1369 = vpop.f32.mrf.mxu0
        %1370 = vmatprep.mubr.f32.mxu0 0.0
        %1371 = vmatmul.mubr.f32.gmra.mxu0 %v1073
        %v1372 = vpop.f32.mrf.mxu0
        %v1373 = vadd.f32 %v1006, %v1372
        %v1374 = vpop.f32.mrf.mxu0
        %1375 = vmatprep.mubr.f32.mxu0 0.0
        %1376 = vmatmul.mubr.f32.gmra.mxu0 %v1076
        %v1377 = vpop.f32.mrf.mxu0
        %v1378 = vadd.f32 %v1006, %v1377
        %v1379 = vpop.f32.mrf.mxu0
        %1380 = vmatprep.mubr.f32.mxu0 0.0
        %1381 = vmatmul.mubr.f32.gmra.mxu0 %v1079
        %v1382 = vpop.f32.mrf.mxu0
        %v1383 = vadd.f32 %v1006, %v1382
        %v1384 = vpop.f32.mrf.mxu0
        %1385 = vmatprep.mubr.f32.mxu0 0.0
        %1386 = vmatmul.mubr.f32.gmra.mxu0 %v1082
        %v1387 = vpop.f32.mrf.mxu0
        %v1388 = vadd.f32 %v1006, %v1387
        %v1389 = vpop.f32.mrf.mxu0
        %1390 = vmatprep.mubr.f32.mxu0 0.0
        %1391 = vmatmul.mubr.f32.gmra.mxu0 %v1085
        %v1392 = vpop.f32.mrf.mxu0
        %v1393 = vadd.f32 %v1006, %v1392
        %v1394 = vpop.f32.mrf.mxu0
        %1395 = vmatprep.mubr.f32.mxu0 0.0
        %1396 = vmatmul.mubr.f32.gmra.mxu0 %v1088
        %v1397 = vpop.f32.mrf.mxu0
        %v1398 = vadd.f32 %v1006, %v1397
        %v1399 = vpop.f32.mrf.mxu0
        %1400 = vmatprep.mubr.f32.mxu0 0.0
        %1401 = vmatmul.mubr.f32.gmra.mxu0 %v1091
        %v1402 = vpop.f32.mrf.mxu0
        %v1403 = vadd.f32 %v1006, %v1402
        %v1404 = vpop.f32.mrf.mxu0
        %1405 = vmatprep.mubr.f32.mxu0 0.0
        %1406 = vmatmul.mubr.f32.gmra.mxu0 %v1094
        %v1407 = vpop.f32.mrf.mxu0
        %v1408 = vadd.f32 %v1006, %v1407
        %v1409 = vpop.f32.mrf.mxu0
        %1410 = vmatprep.mubr.f32.mxu0 0.0
        %1411 = vmatmul.mubr.f32.gmra.mxu0 %v1097
        %v1412 = vpop.f32.mrf.mxu0
        %v1413 = vadd.f32 %v1006, %v1412
        %v1414 = vpop.f32.mrf.mxu0
        %1415 = vmatprep.mubr.f32.mxu0 0.0
        %1416 = vmatmul.mubr.f32.gmra.mxu0 %v1100
        %v1417 = vpop.f32.mrf.mxu0
        %v1418 = vadd.f32 %v1006, %v1417
        %v1419 = vpop.f32.mrf.mxu0
        %1420 = vmatprep.mubr.f32.mxu0 0.0
        %1421 = vmatmul.mubr.f32.gmra.mxu0 %v1103
        %v1422 = vpop.f32.mrf.mxu0
        %v1423 = vadd.f32 %v1006, %v1422
        %v1424 = vpop.f32.mrf.mxu0
        %1425 = vmatprep.mubr.f32.mxu0 0.0
        %1426 = vmatmul.mubr.f32.gmra.mxu0 %v1106
        %v1427 = vpop.f32.mrf.mxu0
        %v1428 = vadd.f32 %v1006, %v1427
        %v1429 = vpop.f32.mrf.mxu0
        %1430 = vmatprep.mubr.f32.mxu0 0.0
        %1431 = vmatmul.mubr.f32.gmra.mxu0 %v1109
        %v1432 = vpop.f32.mrf.mxu0
        %v1433 = vadd.f32 %v1006, %v1432
        %v1434 = vpop.f32.mrf.mxu0
        %1435 = vmatprep.mubr.f32.mxu0 0.0
        %1436 = vmatmul.mubr.f32.gmra.mxu0 %v1112
        %v1437 = vpop.f32.mrf.mxu0
        %v1438 = vadd.f32 %v1006, %v1437
        %v1439 = vpop.f32.mrf.mxu0
        %1440 = vmatprep.mubr.f32.mxu0 0.0
        %1441 = vmatmul.mubr.f32.gmra.mxu0 %v1115
        %v1442 = vpop.f32.mrf.mxu0
        %v1443 = vadd.f32 %v1006, %v1442
        %v1444 = vpop.f32.mrf.mxu0
        %1445 = vmatprep.mubr.f32.mxu0 0.0
        %1446 = vmatmul.mubr.f32.gmra.mxu0 %v1118
        %v1447 = vpop.f32.mrf.mxu0
        %v1448 = vadd.f32 %v1006, %v1447
        %v1449 = vpop.f32.mrf.mxu0
        %1450 = vmatprep.mubr.f32.mxu0 0.0
        %1451 = vmatmul.mubr.f32.gmra.mxu0 %v1121
        %v1452 = vpop.f32.mrf.mxu0
        %v1453 = vadd.f32 %v1006, %v1452
        %v1454 = vpop.f32.mrf.mxu0
        %1455 = vmatprep.mubr.f32.mxu0 0.0
        %1456 = vmatmul.mubr.f32.gmra.mxu0 %v1124
        %v1457 = vpop.f32.mrf.mxu0
        %v1458 = vadd.f32 %v1006, %v1457
        %v1459 = vpop.f32.mrf.mxu0
        %1460 = vmatprep.mubr.f32.mxu0 0.0
        %1461 = vmatmul.mubr.f32.gmra.mxu0 %v1127
        %v1462 = vpop.f32.mrf.mxu0
        %v1463 = vadd.f32 %v1006, %v1462
        %v1464 = vpop.f32.mrf.mxu0
        %1465 = vmatprep.mubr.f32.mxu0 0.0
        %1466 = vmatmul.mubr.f32.gmra.mxu0 %v1130
        %v1467 = vpop.f32.mrf.mxu0
        %v1468 = vadd.f32 %v1006, %v1467
        %v1469 = vpop.f32.mrf.mxu0
        %1470 = vmatprep.mubr.f32.mxu0 0.0
        %1471 = vmatmul.mubr.f32.gmra.mxu0 %v1133
        %v1472 = vpop.f32.mrf.mxu0
        %v1473 = vadd.f32 %v1006, %v1472
        %v1474 = vpop.f32.mrf.mxu0
        %1475 = vmatprep.mubr.f32.mxu0 0.0
        %1476 = vmatmul.mubr.f32.gmra.mxu0 %v1136
        %v1477 = vpop.f32.mrf.mxu0
        %v1478 = vadd.f32 %v1006, %v1477
        %v1479 = vpop.f32.mrf.mxu0
        %1480 = vmatprep.mubr.f32.mxu0 0.0
        %1481 = vmatmul.mubr.f32.gmra.mxu0 %v1139
        %v1482 = vpop.f32.mrf.mxu0
        %v1483 = vadd.f32 %v1006, %v1482
        %v1484 = vpop.f32.mrf.mxu0
        %1485 = vmatprep.mubr.f32.mxu0 0.0
        %1486 = vmatmul.mubr.f32.gmra.mxu0 %v1142
        %v1487 = vpop.f32.mrf.mxu0
        %v1488 = vadd.f32 %v1006, %v1487
        %v1489 = vpop.f32.mrf.mxu0
        %1490 = vmatprep.mubr.f32.mxu0 0.0
        %1491 = vmatmul.mubr.f32.gmra.mxu0 %v1145
        %v1492 = vpop.f32.mrf.mxu0
        %v1493 = vadd.f32 %v1006, %v1492
        %v1494 = vpop.f32.mrf.mxu0
        %1495 = vmatprep.mubr.f32.mxu0 0.0
        %1496 = vmatmul.mubr.f32.gmra.mxu0 %v1148
        %v1497 = vpop.f32.mrf.mxu0
        %v1498 = vadd.f32 %v1006, %v1497
        %v1499 = vpop.f32.mrf.mxu0
        %1500 = vmatprep.mubr.f32.mxu0 0.0
        %1501 = vmatmul.mubr.f32.gmra.mxu0 %v1151
        %v1502 = vpop.f32.mrf.mxu0
        %v1503 = vadd.f32 %v1006, %v1502
        %v1504 = vpop.f32.mrf.mxu0
        %1505 = vmatprep.mubr.f32.mxu0 0.0
        %1506 = vmatmul.mubr.f32.gmra.mxu0 %v1154
        %v1507 = vpop.f32.mrf.mxu0
        %v1508 = vadd.f32 %v1006, %v1507
        %v1509 = vpop.f32.mrf.mxu0
        %1510 = vmatprep.mubr.f32.mxu0 0.0
        %1511 = vmatmul.mubr.f32.gmra.mxu0 %v1157
        %v1512 = vpop.f32.mrf.mxu0
        %v1513 = vadd.f32 %v1006, %v1512
        %v1514 = vpop.f32.mrf.mxu0
        %1515 = vmatprep.mubr.f32.mxu0 0.0
        %1516 = vmatmul.mubr.f32.gmra.mxu0 %v1160
        %v1517 = vpop.f32.mrf.mxu0
        %v1518 = vadd.f32 %v1006, %v1517
        %v1519 = vpop.f32.mrf.mxu0
        %1520 = vmatprep.mubr.f32.mxu0 0.0
        %1521 = vmatmul.mubr.f32.gmra.mxu0 %v1163
        %v1522 = vpop.f32.mrf.mxu0
        %v1523 = vadd.f32 %v1006, %v1522
        %v1524 = vpop.f32.mrf.mxu0
        %1525 = vmatprep.mubr.f32.mxu0 0.0
        %1526 = vmatmul.mubr.f32.gmra.mxu0 %v1166
        %v1527 = vpop.f32.mrf.mxu0
        %v1528 = vadd.f32 %v1006, %v1527
        %v1529 = vpop.f32.mrf.mxu0
        %1530 = vmatprep.mubr.f32.mxu0 0.0
        %1531 = vmatmul.mubr.f32.gmra.mxu0 %v1169
        %v1532 = vpop.f32.mrf.mxu0
        %v1533 = vadd.f32 %v1006, %v1532
        %v1534 = vpop.f32.mrf.mxu0
        %1535 = vmatprep.mubr.f32.mxu0 0.0
        %1536 = vmatmul.mubr.f32.gmra.mxu0 %v1172
        %v1537 = vpop.f32.mrf.mxu0
        %v1538 = vadd.f32 %v1006, %v1537
        %v1539 = vpop.f32.mrf.mxu0
        %1540 = vmatprep.mubr.f32.mxu0 0.0
        %1541 = vmatmul.mubr.f32.gmra.mxu0 %v1175
        %v1542 = vpop.f32.mrf.mxu0
        %v1543 = vadd.f32 %v1006, %v1542
        %v1544 = vpop.f32.mrf.mxu0
        %1545 = vmatprep.mubr.f32.mxu0 0.0
        %1546 = vmatmul.mubr.f32.gmra.mxu0 %v1178
        %v1547 = vpop.f32.mrf.mxu0
        %v1548 = vadd.f32 %v1006, %v1547
        %v1549 = vpop.f32.mrf.mxu0
        %1550 = vmatprep.mubr.f32.mxu0 0.0
        %1551 = vmatmul.mubr.f32.gmra.mxu0 %v1181
        %v1552 = vpop.f32.mrf.mxu0
        %v1553 = vadd.f32 %v1006, %v1552
        %v1554 = vpop.f32.mrf.mxu0
        %1555 = vmatprep.mubr.f32.mxu0 0.0
        %1556 = vmatmul.mubr.f32.gmra.mxu0 %v1184
        %v1557 = vpop.f32.mrf.mxu0
        %v1558 = vadd.f32 %v1006, %v1557
        %v1559 = vpop.f32.mrf.mxu0
        %1560 = vmatprep.mubr.f32.mxu0 0.0
        %1561 = vmatmul.mubr.f32.gmra.mxu0 %v1187
        %v1562 = vpop.f32.mrf.mxu0
        %v1563 = vadd.f32 %v1006, %v1562
        %v1564 = vpop.f32.mrf.mxu0
        %1565 = vmatprep.mubr.f32.mxu0 0.0
        %1566 = vmatmul.mubr.f32.gmra.mxu0 %v1190
        %v1567 = vpop.f32.mrf.mxu0
        %v1568 = vadd.f32 %v1006, %v1567
        %v1569 = vpop.f32.mrf.mxu0
        %1570 = vmatprep.mubr.f32.mxu0 0.0
        %1571 = vmatmul.mubr.f32.gmra.mxu0 %v1193
        %v1572 = vpop.f32.mrf.mxu0
        %v1573 = vadd.f32 %v1006, %v1572
        %v1574 = vpop.f32.mrf.mxu0
        %1575 = vmatprep.mubr.f32.mxu0 0.0
        %1576 = vmatmul.mubr.f32.gmra.mxu0 %v1196
        %v1577 = vpop.f32.mrf.mxu0
        %v1578 = vadd.f32 %v1006, %v1577
        %v1579 = vpop.f32.mrf.mxu0
        %1580 = vmatprep.mubr.f32.mxu0 0.0
        %1581 = vmatmul.mubr.f32.gmra.mxu0 %v1199
        %v1582 = vpop.f32.mrf.mxu0
        %v1583 = vadd.f32 %v1006, %v1582
        %v1584 = vpop.f32.mrf.mxu0
        %1585 = vdwg.mxu0
        %v1586 = vmax.f32 %v1268, 0.0
        %v1587 = vmax.f32 %v1273, 0.0
        %v1588 = vmax.f32 %v1278, 0.0
        %v1589 = vmax.f32 %v1283, 0.0
        %v1590 = vmax.f32 %v1288, 0.0
        %v1591 = vmax.f32 %v1293, 0.0
        %v1592 = vmax.f32 %v1298, 0.0
        %v1593 = vmax.f32 %v1303, 0.0
        %v1594 = vmax.f32 %v1308, 0.0
        %v1595 = vmax.f32 %v1313, 0.0
        %v1596 = vmax.f32 %v1318, 0.0
        %v1597 = vmax.f32 %v1323, 0.0
        %v1598 = vmax.f32 %v1328, 0.0
        %v1599 = vmax.f32 %v1333, 0.0
        %v1600 = vmax.f32 %v1338, 0.0
        %v1601 = vmax.f32 %v1343, 0.0
        %v1602 = vmax.f32 %v1348, 0.0
        %v1603 = vmax.f32 %v1353, 0.0
        %v1604 = vmax.f32 %v1358, 0.0
        %v1605 = vmax.f32 %v1363, 0.0
        %v1606 = vmax.f32 %v1368, 0.0
        %v1607 = vmax.f32 %v1373, 0.0
        %v1608 = vmax.f32 %v1378, 0.0
        %v1609 = vmax.f32 %v1383, 0.0
        %v1610 = vmax.f32 %v1388, 0.0
        %v1611 = vmax.f32 %v1393, 0.0
        %v1612 = vmax.f32 %v1398, 0.0
        %v1613 = vmax.f32 %v1403, 0.0
        %v1614 = vmax.f32 %v1408, 0.0
        %v1615 = vmax.f32 %v1413, 0.0
        %v1616 = vmax.f32 %v1418, 0.0
        %v1617 = vmax.f32 %v1423, 0.0
        %v1618 = vmax.f32 %v1428, 0.0
        %v1619 = vmax.f32 %v1433, 0.0
        %v1620 = vmax.f32 %v1438, 0.0
        %v1621 = vmax.f32 %v1443, 0.0
        %v1622 = vmax.f32 %v1448, 0.0
        %v1623 = vmax.f32 %v1453, 0.0
        %v1624 = vmax.f32 %v1458, 0.0
        %v1625 = vmax.f32 %v1463, 0.0
        %v1626 = vmax.f32 %v1468, 0.0
        %v1627 = vmax.f32 %v1473, 0.0
        %v1628 = vmax.f32 %v1478, 0.0
        %v1629 = vmax.f32 %v1483, 0.0
        %v1630 = vmax.f32 %v1488, 0.0
        %v1631 = vmax.f32 %v1493, 0.0
        %v1632 = vmax.f32 %v1498, 0.0
        %v1633 = vmax.f32 %v1503, 0.0
        %v1634 = vmax.f32 %v1508, 0.0
        %v1635 = vmax.f32 %v1513, 0.0
        %v1636 = vmax.f32 %v1518, 0.0
        %v1637 = vmax.f32 %v1523, 0.0
        %v1638 = vmax.f32 %v1528, 0.0
        %v1639 = vmax.f32 %v1533, 0.0
        %v1640 = vmax.f32 %v1538, 0.0
        %v1641 = vmax.f32 %v1543, 0.0
        %v1642 = vmax.f32 %v1548, 0.0
        %v1643 = vmax.f32 %v1553, 0.0
        %v1644 = vmax.f32 %v1558, 0.0
        %v1645 = vmax.f32 %v1563, 0.0
        %v1646 = vmax.f32 %v1568, 0.0
        %v1647 = vmax.f32 %v1573, 0.0
        %v1648 = vmax.f32 %v1578, 0.0
        %v1649 = vmax.f32 %v1583, 0.0
        %v1650 = vld [vmem:[%s5] sm:$0x1]
        %v1651 = vld [vmem:[#allocation2] sm:$0x1]
        %1653 = vset.pattern.permute.xlu0 0
        %1654 = vperm.xlu0 %1653, %v1651
        %v1655 = vpop.permute.xlu0 %1654
        %v1657 = vlaneseq
        %v1658 = vshrl.u32 %v1657, 7
        %v1659 = vsub.s32 0, %v1658
        %v1660 = vrot.slane %v1655, %v1659
        %v1662 = vsel %vm1008, %v1650, 0
        %v1665 = vsel %vm1008, %v1586, 0
        %v1668 = vsel %vm1008, %v1587, 0
        %v1671 = vsel %vm1008, %v1588, 0
        %v1674 = vsel %vm1008, %v1589, 0
        %v1677 = vsel %vm1008, %v1590, 0
        %v1680 = vsel %vm1008, %v1591, 0
        %v1683 = vsel %vm1008, %v1592, 0
        %v1686 = vsel %vm1008, %v1593, 0
        %v1689 = vsel %vm1008, %v1594, 0
        %v1692 = vsel %vm1008, %v1595, 0
        %v1695 = vsel %vm1008, %v1596, 0
        %v1698 = vsel %vm1008, %v1597, 0
        %v1701 = vsel %vm1008, %v1598, 0
        %v1704 = vsel %vm1008, %v1599, 0
        %v1707 = vsel %vm1008, %v1600, 0
        %v1710 = vsel %vm1008, %v1601, 0
        %v1713 = vsel %vm1008, %v1602, 0
        %v1716 = vsel %vm1008, %v1603, 0
        %v1719 = vsel %vm1008, %v1604, 0
        %v1722 = vsel %vm1008, %v1605, 0
        %v1725 = vsel %vm1008, %v1606, 0
        %v1728 = vsel %vm1008, %v1607, 0
        %v1731 = vsel %vm1008, %v1608, 0
        %v1734 = vsel %vm1008, %v1609, 0
        %v1737 = vsel %vm1008, %v1610, 0
        %v1740 = vsel %vm1008, %v1611, 0
        %v1743 = vsel %vm1008, %v1612, 0
        %v1746 = vsel %vm1008, %v1613, 0
        %v1749 = vsel %vm1008, %v1614, 0
        %v1752 = vsel %vm1008, %v1615, 0
        %v1755 = vsel %vm1008, %v1616, 0
        %v1758 = vsel %vm1008, %v1617, 0
        %v1761 = vsel %vm1008, %v1618, 0
        %v1764 = vsel %vm1008, %v1619, 0
        %v1767 = vsel %vm1008, %v1620, 0
        %v1770 = vsel %vm1008, %v1621, 0
        %v1773 = vsel %vm1008, %v1622, 0
        %v1776 = vsel %vm1008, %v1623, 0
        %v1779 = vsel %vm1008, %v1624, 0
        %v1782 = vsel %vm1008, %v1625, 0
        %v1785 = vsel %vm1008, %v1626, 0
        %v1788 = vsel %vm1008, %v1627, 0
        %v1791 = vsel %vm1008, %v1628, 0
        %v1794 = vsel %vm1008, %v1629, 0
        %v1797 = vsel %vm1008, %v1630, 0
        %v1800 = vsel %vm1008, %v1631, 0
        %v1803 = vsel %vm1008, %v1632, 0
        %v1806 = vsel %vm1008, %v1633, 0
        %v1809 = vsel %vm1008, %v1634, 0
        %v1812 = vsel %vm1008, %v1635, 0
        %v1815 = vsel %vm1008, %v1636, 0
        %v1818 = vsel %vm1008, %v1637, 0
        %v1821 = vsel %vm1008, %v1638, 0
        %v1824 = vsel %vm1008, %v1639, 0
        %v1827 = vsel %vm1008, %v1640, 0
        %v1830 = vsel %vm1008, %v1641, 0
        %v1833 = vsel %vm1008, %v1642, 0
        %v1836 = vsel %vm1008, %v1643, 0
        %v1839 = vsel %vm1008, %v1644, 0
        %v1842 = vsel %vm1008, %v1645, 0
        %v1845 = vsel %vm1008, %v1646, 0
        %v1848 = vsel %vm1008, %v1647, 0
        %v1851 = vsel %vm1008, %v1648, 0
        %v1854 = vsel %vm1008, %v1649, 0
        %1856 = vmatprep.subr.mxu0 0.0
        %1857 = vmatpush1.xpose.msra.mxu0 %v1710
        %1858 = vmatprep.subr.mxu0 0.0
        %1859 = vmatpush1.xpose.msra.mxu0 %v1707
        %1860 = vmatprep.subr.mxu0 0.0
        %1861 = vmatpush1.xpose.msra.mxu0 %v1704
        %1862 = vmatprep.subr.mxu0 0.0
        %1863 = vmatpush1.xpose.msra.mxu0 %v1701
        %1864 = vmatprep.subr.mxu0 0.0
        %1865 = vmatpush1.xpose.msra.mxu0 %v1698
        %1866 = vmatprep.subr.mxu0 0.0
        %1867 = vmatpush1.xpose.msra.mxu0 %v1695
        %1868 = vmatprep.subr.mxu0 0.0
        %1869 = vmatpush1.xpose.msra.mxu0 %v1692
        %1870 = vmatprep.subr.mxu0 0.0
        %1871 = vmatpush1.xpose.msra.mxu0 %v1689
        %1872 = vmatprep.subr.mxu0 0.0
        %1873 = vmatpush1.xpose.msra.mxu0 %v1686
        %1874 = vmatprep.subr.mxu0 0.0
        %1875 = vmatpush1.xpose.msra.mxu0 %v1683
        %1876 = vmatprep.subr.mxu0 0.0
        %1877 = vmatpush1.xpose.msra.mxu0 %v1680
        %1878 = vmatprep.subr.mxu0 0.0
        %1879 = vmatpush1.xpose.msra.mxu0 %v1677
        %1880 = vmatprep.subr.mxu0 0.0
        %1881 = vmatpush1.xpose.msra.mxu0 %v1674
        %1882 = vmatprep.subr.mxu0 0.0
        %1883 = vmatpush1.xpose.msra.mxu0 %v1671
        %1884 = vmatprep.subr.mxu0 0.0
        %1885 = vmatpush1.xpose.msra.mxu0 %v1668
        %1886 = vmatprep.subr.mxu0 0.0
        %1887 = vmatpush1.xpose.msra.mxu0 %v1665
        %1888 = vmatprep.subr.mxu0 0.0
        %1889 = vmatpush2.xpose.msra.mxu0 %v1758
        %1890 = vmatprep.subr.mxu0 0.0
        %1891 = vmatpush2.xpose.msra.mxu0 %v1755
        %1892 = vmatprep.subr.mxu0 0.0
        %1893 = vmatpush2.xpose.msra.mxu0 %v1752
        %1894 = vmatprep.subr.mxu0 0.0
        %1895 = vmatpush2.xpose.msra.mxu0 %v1749
        %1896 = vmatprep.subr.mxu0 0.0
        %1897 = vmatpush2.xpose.msra.mxu0 %v1746
        %1898 = vmatprep.subr.mxu0 0.0
        %1899 = vmatpush2.xpose.msra.mxu0 %v1743
        %1900 = vmatprep.subr.mxu0 0.0
        %1901 = vmatpush2.xpose.msra.mxu0 %v1740
        %1902 = vmatprep.subr.mxu0 0.0
        %1903 = vmatpush2.xpose.msra.mxu0 %v1737
        %1904 = vmatprep.subr.mxu0 0.0
        %1905 = vmatpush2.xpose.msra.mxu0 %v1734
        %1906 = vmatprep.subr.mxu0 0.0
        %1907 = vmatpush2.xpose.msra.mxu0 %v1731
        %1908 = vmatprep.subr.mxu0 0.0
        %1909 = vmatpush2.xpose.msra.mxu0 %v1728
        %1910 = vmatprep.subr.mxu0 0.0
        %1911 = vmatpush2.xpose.msra.mxu0 %v1725
        %1912 = vmatprep.subr.mxu0 0.0
        %1913 = vmatpush2.xpose.msra.mxu0 %v1722
        %1914 = vmatprep.subr.mxu0 0.0
        %1915 = vmatpush2.xpose.msra.mxu0 %v1719
        %1916 = vmatprep.subr.mxu0 0.0
        %1917 = vmatpush2.xpose.msra.mxu0 %v1716
        %1918 = vmatprep.subr.mxu0 0.0
        %1919 = vmatpush2.xpose.msra.mxu0 %v1713
        %1920 = vmatprep.mubr.f32.mxu0 0.0
        %1921 = vmatmul.mubr.f32.gmra.mxu0 %v1662
        %v1922 = vpop.f32.mrf.mxu0
        %v1923 = vadd.f32 %v1660, %v1922
        %v1924 = vpop.f32.mrf.mxu0
        %v1925 = vadd.f32 %v1660, %v1924
        %1926 = vdwg.mxu0
        %1927 = vmatprep.subr.mxu0 0.0
        %1928 = vmatpush1.xpose.msra.mxu0 %v1806
        %1929 = vmatprep.subr.mxu0 0.0
        %1930 = vmatpush1.xpose.msra.mxu0 %v1803
        %1931 = vmatprep.subr.mxu0 0.0
        %1932 = vmatpush1.xpose.msra.mxu0 %v1800
        %1933 = vmatprep.subr.mxu0 0.0
        %1934 = vmatpush1.xpose.msra.mxu0 %v1797
        %1935 = vmatprep.subr.mxu0 0.0
        %1936 = vmatpush1.xpose.msra.mxu0 %v1794
        %1937 = vmatprep.subr.mxu0 0.0
        %1938 = vmatpush1.xpose.msra.mxu0 %v1791
        %1939 = vmatprep.subr.mxu0 0.0
        %1940 = vmatpush1.xpose.msra.mxu0 %v1788
        %1941 = vmatprep.subr.mxu0 0.0
        %1942 = vmatpush1.xpose.msra.mxu0 %v1785
        %1943 = vmatprep.subr.mxu0 0.0
        %1944 = vmatpush1.xpose.msra.mxu0 %v1782
        %1945 = vmatprep.subr.mxu0 0.0
        %1946 = vmatpush1.xpose.msra.mxu0 %v1779
        %1947 = vmatprep.subr.mxu0 0.0
        %1948 = vmatpush1.xpose.msra.mxu0 %v1776
        %1949 = vmatprep.subr.mxu0 0.0
        %1950 = vmatpush1.xpose.msra.mxu0 %v1773
        %1951 = vmatprep.subr.mxu0 0.0
        %1952 = vmatpush1.xpose.msra.mxu0 %v1770
        %1953 = vmatprep.subr.mxu0 0.0
        %1954 = vmatpush1.xpose.msra.mxu0 %v1767
        %1955 = vmatprep.subr.mxu0 0.0
        %1956 = vmatpush1.xpose.msra.mxu0 %v1764
        %1957 = vmatprep.subr.mxu0 0.0
        %1958 = vmatpush1.xpose.msra.mxu0 %v1761
        %1959 = vmatprep.subr.mxu0 0.0
        %1960 = vmatpush2.xpose.msra.mxu0 %v1854
        %1961 = vmatprep.subr.mxu0 0.0
        %1962 = vmatpush2.xpose.msra.mxu0 %v1851
        %1963 = vmatprep.subr.mxu0 0.0
        %1964 = vmatpush2.xpose.msra.mxu0 %v1848
        %1965 = vmatprep.subr.mxu0 0.0
        %1966 = vmatpush2.xpose.msra.mxu0 %v1845
        %1967 = vmatprep.subr.mxu0 0.0
        %1968 = vmatpush2.xpose.msra.mxu0 %v1842
        %1969 = vmatprep.subr.mxu0 0.0
        %1970 = vmatpush2.xpose.msra.mxu0 %v1839
        %1971 = vmatprep.subr.mxu0 0.0
        %1972 = vmatpush2.xpose.msra.mxu0 %v1836
        %1973 = vmatprep.subr.mxu0 0.0
        %1974 = vmatpush2.xpose.msra.mxu0 %v1833
        %1975 = vmatprep.subr.mxu0 0.0
        %1976 = vmatpush2.xpose.msra.mxu0 %v1830
        %1977 = vmatprep.subr.mxu0 0.0
        %1978 = vmatpush2.xpose.msra.mxu0 %v1827
        %1979 = vmatprep.subr.mxu0 0.0
        %1980 = vmatpush2.xpose.msra.mxu0 %v1824
        %1981 = vmatprep.subr.mxu0 0.0
        %1982 = vmatpush2.xpose.msra.mxu0 %v1821
        %1983 = vmatprep.subr.mxu0 0.0
        %1984 = vmatpush2.xpose.msra.mxu0 %v1818
        %1985 = vmatprep.subr.mxu0 0.0
        %1986 = vmatpush2.xpose.msra.mxu0 %v1815
        %1987 = vmatprep.subr.mxu0 0.0
        %1988 = vmatpush2.xpose.msra.mxu0 %v1812
        %1989 = vmatprep.subr.mxu0 0.0
        %1990 = vmatpush2.xpose.msra.mxu0 %v1809
        %1991 = vmatprep.mubr.f32.mxu0 0.0
        %1992 = vmatmul.mubr.f32.gmra.mxu0 %v1662
        %v1993 = vpop.f32.mrf.mxu0
        %v1994 = vadd.f32 %v1660, %v1993
        %v1995 = vpop.f32.mrf.mxu0
        %v1996 = vadd.f32 %v1660, %v1995
        %1997 = vdwg.mxu0
        %v2002 = vcombine.low %v1923, %v1925
        %v2003 = vcombine.low %v1994, %v1996
        %v2005 = vunpack.c.l.s4 1966171168
        %v2006 = vunpack.c.0.s8 %v2005
        %v2007 = vlaneseq
        %v2008 = vshrl.u32 %v2007, 7
        %v2009 = vsub.s32 %v2006, %v2008
        %v2010 = vrot.slane %v2002, %v2009
        %v2012 = vunpack.c.l.s4 1966171168
        %v2013 = vunpack.c.0.s8 %v2012
        %v2014 = vlaneseq
        %v2015 = vshrl.u32 %v2014, 7
        %v2016 = vsub.s32 %v2013, %v2015
        %v2017 = vrot.slane %v2003, %v2016
        %v2018 = vcombine.low %v2010, %v2017
        %v2020 = vunpack.c.l.s4 1966171168
        %v2021 = vunpack.c.0.s8 %v2020
        %v2022 = vlaneseq
        %v2023 = vshrl.u32 %v2022, 7
        %v2024 = vsub.s32 %v2021, %v2023
        %v2025 = vrot.slane %v2018, %v2024
        %v2027 = vlaneseq
        %vm2028 = vcmp.ge.s32.totalorder %v2027, 0
        %vm2029 = vcmp.lt.s32.totalorder %v2027, 512
        %vm2030 = vmand %vm2028, %vm2029
        %2031 = vst.msk [vmem:[%s274] sm:$0xf] %vm2030, %v2025
        %s2032 = sand.u32 %s183, 1
        %s2033 = scalar_lea.sflag [#allocation4], %s2032
        %s2034 = sand.u32 %s183, 1
        %s2035 = smul.addr %s2034, 4
        %s2036 = scalar_lea.vmem [#allocation3], %s2035
        // Predicated region
        $region49: #{mlp_forward.1} parent=47 // pred_check
          %p2037 = pneg %p193
        $region50: #{mlp_forward.1} parent=47 // pred_check_branch
          %2039 = sbr.rel (%p2037) target = $region52
        $region51: #{mlp_forward.1} parent=47 // pred_region
          %s2040 = smul.u32 4, %s23
          %s2042 = ssub.s32 64, 64
          %2043 = vsyncadd %s2033, %s2042
          %s2044 = smul.addr %s2040, 16
          %s2045 = scalar_lea.hbm %s7, %s2044
          %s2047 = sshll.u32 %s2036, 4
          %s2048 = int_to_ptr.vmem [resolvable:$true] %s2047
          %2050 = dma.vmem_to_hbm [thread:$0]  %s2048, 64, %s2045, %s2033
        $region52: #{mlp_forward.1} parent=47 // pred_fallthru
          _
      $region48: #{mlp_forward.1} parent=5 // pred_fallthru
        _
      %p2051 = scmp.le.s32.totalorder 2, %s18
      // Predicated region
      $region53: #{mlp_forward.1} parent=5 // pred_check
        %p2052 = pneg %p2051
      $region54: #{mlp_forward.1} parent=5 // pred_check_branch
        %2054 = sbr.rel (%p2052) target = $region56
      $region55: #{mlp_forward.1} parent=5 // pred_region
        %s2055 = ssub.s32 %s18, 2
        // Predicated region
        $region57: #{mlp_forward.1} parent=55 // pred_check
          %p2056 = pneg %p199
        $region58: #{mlp_forward.1} parent=55 // pred_check_branch
          %2058 = sbr.rel (%p2056) target = $region60
        $region59: #{mlp_forward.1} parent=55 // pred_region
          %s2059 = sand.u32 %s184, 1
          %s2060 = scalar_lea.sflag [#allocation4], %s2059
          %s2061 = sand.u32 %s184, 1
          %s2062 = smul.addr %s2061, 4
          %s2063 = scalar_lea.vmem [#allocation3], %s2062
          %2064 = dma.done %s2060, 64
        $region60: #{mlp_forward.1} parent=55 // pred_fallthru
          _
      $region56: #{mlp_forward.1} parent=5 // pred_fallthru
        _
    $region6: #{mlp_forward.1} parent=1 // loop_footer
      %s22 = sadd.s32 1, %s18
    $region7: #{mlp_forward.1} parent=1 // loop_footer_branch
      %17 = sbr.rel target = $region3
    $region8: #{mlp_forward.1} parent=1 // loop_exit
      _
    %2065 = vsyncpa [#allocation4], 1
    %s2066 = scalar_lea.sflag [#allocation4], 1
    %2067 = vsyncpa %s2066, 1

</llo_original>
